<compile_context>
chip_gen: v5e
topology: v5e:2x2
jax: 0.10.0
libtpu: 0.0.40
codegen_flags: <defaults>
</compile_context>

<pallas_src>
import functools
import math

import jax
import jax.numpy as jnp
from jax.experimental import pallas as pl
from jax.experimental.pallas import tpu as pltpu


def _layernorm(x, gamma, beta, eps=1e-5):
    mu = jnp.mean(x, axis=-1, keepdims=True)
    var = jnp.mean((x - mu) ** 2, axis=-1, keepdims=True)
    return (x - mu) * jax.lax.rsqrt(var + eps) * gamma + beta


def encoder_stack_kernel(n_head,
                         x_ref, mask_ref,
                         wq_ref, bq_ref, wk_ref, bk_ref, wv_ref, bv_ref,
                         wo_ref, bo_ref,
                         g1_ref, be1_ref,
                         w1_ref, bf1_ref, w2_ref, bf2_ref,
                         g2_ref, be2_ref,
                         o_ref, carry_ref):
    """One (batch element, layer) step of the fused post-norm encoder stack."""
    l = pl.program_id(1)
    n_layers = pl.num_programs(1)

    # Load the HBM input only for the first layer; afterwards the activation
    # stays resident in the VMEM carry across the whole layer stack.
    @pl.when(l == 0)
    def _():
        carry_ref[...] = x_ref[0].astype(jnp.float32)

    x = carry_ref[...]                      # (S, D) f32
    S, D = x.shape
    H = n_head

    # Additive key-padding bias (computed once per grid step): 0 where valid,
    # -1e9 where masked.  Shape (1, 1, S), broadcasts over (H, S, S) scores.
    neg_bias = (mask_ref[...] - 1.0) * 1e9

    x_bf = x.astype(jnp.bfloat16)
    xb = jnp.broadcast_to(x_bf[None], (H, S, D))        # head-batched input (tiny)

    # --- multi-head self attention (all heads in single batched einsums) ---
    # Weights are pre-reshaped host-side to head-major (H, D, dh); the 1/sqrt(dh)
    # scale is already folded into wq/bq.
    q = jnp.einsum('hsd,hde->hse', xb, wq_ref[0],
                   preferred_element_type=jnp.float32) + bq_ref[0]   # (H, S, dh)
    k = jnp.einsum('hsd,hde->hse', xb, wk_ref[0],
                   preferred_element_type=jnp.float32) + bk_ref[0]
    v = jnp.einsum('hsd,hde->hse', xb, wv_ref[0],
                   preferred_element_type=jnp.float32) + bv_ref[0]

    s = jnp.einsum('hqd,hkd->hqk',
                   q.astype(jnp.bfloat16), k.astype(jnp.bfloat16),
                   preferred_element_type=jnp.float32)               # (H, S, S)
    s = s + neg_bias
    s = s - jnp.max(s, axis=-1, keepdims=True)                       # stable softmax
    p = jnp.exp(s)
    p = p * pl.reciprocal(jnp.sum(p, axis=-1, keepdims=True), approx=True)

    ctx = jnp.einsum('hqk,hkd->hqd',
                     p.astype(jnp.bfloat16), v.astype(jnp.bfloat16),
                     preferred_element_type=jnp.float32)             # (H, S, dh)

    # Output projection folded over heads: wo pre-reshaped to (H, dh, D),
    # contract dh per head and sum head contributions.
    attn = jnp.einsum('hsd,hde->hse',
                      ctx.astype(jnp.bfloat16), wo_ref[0],
                      preferred_element_type=jnp.float32)            # (H, S, D)
    attn = jnp.sum(attn, axis=0) + bo_ref[0]                         # (S, D)

    # --- residual + post-LayerNorm 1 (dropout = identity) ---
    x1 = _layernorm(attn + x, g1_ref[0], be1_ref[0])

    # --- position-wise FFN: Linear -> ReLU -> Linear (2-D MXU matmuls) ---
    h1 = jnp.dot(x1.astype(jnp.bfloat16), w1_ref[0],
                 preferred_element_type=jnp.float32) + bf1_ref[0]
    h1 = jnp.maximum(h1, 0.0)
    ffn = jnp.dot(h1.astype(jnp.bfloat16), w2_ref[0],
                  preferred_element_type=jnp.float32) + bf2_ref[0]

    # --- residual + post-LayerNorm 2 ---
    x2 = _layernorm(ffn + x1, g2_ref[0], be2_ref[0])

    carry_ref[...] = x2                          # feeds the next layer

    # Store to the (VMEM-resident) output block only once, at the last layer.
    @pl.when(l == n_layers - 1)
    def _():
        o_ref[0] = x2.astype(o_ref.dtype)


_PARAM_ORDER = ("wq", "bq", "wk", "bk", "wv", "bv", "wo", "bo",
                "g1", "be1", "w1", "bf1", "w2", "bf2", "g2", "be2")


def pack_params(params, n_head):
    """Stack per-layer params along a leading L axis; pre-reshape attention
    weights to head-major layout; fold the attention scale into Wq/bq; cast
    matmul weights to bf16 (biases / LN params stay f32)."""
    layers = params["layers"]
    L = len(layers)
    D = layers[0]["wq"].shape[0]
    dh = D // n_head
    scale = 1.0 / math.sqrt(dh)

    def stack(key):
        return jnp.stack([lp[key] for lp in layers])

    def qkv_w(key, s=1.0):                           # (L,D,D) -> (L,H,D,dh) bf16
        w = (stack(key) * s).reshape(L, D, n_head, dh).transpose(0, 2, 1, 3)
        return w.astype(jnp.bfloat16)

    def qkv_b(key, s=1.0):                           # (L,1,D) -> (L,H,1,dh) f32
        return (stack(key) * s).reshape(L, 1, n_head, dh).transpose(0, 2, 1, 3)

    return {
        "wq": qkv_w("wq", scale), "bq": qkv_b("bq", scale),
        "wk": qkv_w("wk"), "bk": qkv_b("bk"),
        "wv": qkv_w("wv"), "bv": qkv_b("bv"),
        "wo": stack("wo").reshape(L, n_head, dh, D).astype(jnp.bfloat16),
        "bo": stack("bo"),
        "g1": stack("g1"), "be1": stack("be1"),
        "w1": stack("w1").astype(jnp.bfloat16), "bf1": stack("bf1"),
        "w2": stack("w2").astype(jnp.bfloat16), "bf2": stack("bf2"),
        "g2": stack("g2"), "be2": stack("be2"),
    }


def encoder_forward(x, src_mask, packed, n_head):
    """Encoder.forward: whole post-norm layer stack in ONE pallas_call."""
    B, S, D = x.shape
    L = packed["wq"].shape[0]
    weights = [packed[k] for k in _PARAM_ORDER]

    def wspec(a):
        nd = a.ndim
        return pl.BlockSpec((1,) + a.shape[1:],
                            lambda b, l, _nd=nd: (l,) + (0,) * (_nd - 1))

    in_specs = ([pl.BlockSpec((1, S, D), lambda b, l: (b, 0, 0)),
                 pl.BlockSpec((1, 1, S), lambda b, l: (b, 0, 0))]
                + [wspec(w) for w in weights])

    return pl.pallas_call(
        functools.partial(encoder_stack_kernel, n_head),
        out_shape=jax.ShapeDtypeStruct((B, S, D), x.dtype),
        grid=(B, L),
        in_specs=in_specs,
        out_specs=pl.BlockSpec((1, S, D), lambda b, l: (b, 0, 0)),
        scratch_shapes=[pltpu.VMEM((S, D), jnp.float32)],
        compiler_params=pltpu.CompilerParams(
            dimension_semantics=("parallel", "arbitrary")),
    )(x, src_mask, *weights)
    # TODO(synk): norm_type='pre' would add a final LayerNorm after the stack;
    # default 'post' has none.


def encoder_reference(x, src_mask, params, n_head):
    """Pure-JAX (f32) reference, mirroring the PyTorch post-norm forward."""
    def layernorm(v, g, b, eps=1e-5):
        mu = v.mean(-1, keepdims=True)
        var = ((v - mu) ** 2).mean(-1, keepdims=True)
        return (v - mu) / jnp.sqrt(var + eps) * g + b

    B, S, D = x.shape
    dh = D // n_head
    neg = (src_mask - 1.0) * 1e9                      # (B,1,S)
    for lp in params["layers"]:
        q = x @ lp["wq"] + lp["bq"]
        k = x @ lp["wk"] + lp["bk"]
        v = x @ lp["wv"] + lp["bv"]
        qh = q.reshape(B, S, n_head, dh).transpose(0, 2, 1, 3)
        kh = k.reshape(B, S, n_head, dh).transpose(0, 2, 1, 3)
        vh = v.reshape(B, S, n_head, dh).transpose(0, 2, 1, 3)
        s = jnp.einsum('bhqd,bhkd->bhqk', qh, kh) / math.sqrt(dh)
        s = s + neg[:, :, None, :]
        p = jax.nn.softmax(s, axis=-1)
        ctx = jnp.einsum('bhqk,bhkd->bhqd', p, vh)
        ctx = ctx.transpose(0, 2, 1, 3).reshape(B, S, D)
        attn = ctx @ lp["wo"] + lp["bo"]
        x1 = layernorm(attn + x, lp["g1"], lp["be1"])
        h = jnp.maximum(x1 @ lp["w1"] + lp["bf1"], 0.0)
        ffn = h @ lp["w2"] + lp["bf2"]
        x = layernorm(ffn + x1, lp["g2"], lp["be2"])
    return x


def init_encoder_params(key, d_model, ffn_hidden, n_layers):
    """Deterministic synthetic parameter init (Linear weights stored (in, out))."""
    layers = []
    for li in range(n_layers):
        k = jax.random.fold_in(key, li)
        ks = jax.random.split(k, 12)

        def lin(kw, kb, fan_in, fan_out):
            bound = 1.0 / math.sqrt(fan_in)
            w = jax.random.uniform(kw, (fan_in, fan_out), jnp.float32, -bound, bound)
            b = jax.random.uniform(kb, (1, fan_out), jnp.float32, -bound, bound)
            return w, b

        wq, bq = lin(ks[0], ks[1], d_model, d_model)
        wk, bk = lin(ks[2], ks[3], d_model, d_model)
        wv, bv = lin(ks[4], ks[5], d_model, d_model)
        wo, bo = lin(ks[6], ks[7], d_model, d_model)
        w1, bf1 = lin(ks[8], ks[9], d_model, ffn_hidden)
        w2, bf2 = lin(ks[10], ks[11], ffn_hidden, d_model)
        layers.append({
            "wq": wq, "bq": bq, "wk": wk, "bk": bk, "wv": wv, "bv": bv,
            "wo": wo, "bo": bo,
            "g1": jnp.ones((1, d_model), jnp.float32),
            "be1": jnp.zeros((1, d_model), jnp.float32),
            "w1": w1, "bf1": bf1, "w2": w2, "bf2": bf2,
            "g2": jnp.ones((1, d_model), jnp.float32),
            "be2": jnp.zeros((1, d_model), jnp.float32),
        })
    return {"layers": layers}


if __name__ == "__main__":
    # Small shapes consistent with the module.
    B, S = 2, 8
    d_model, ffn_hidden, n_head, n_layers = 32, 64, 4, 2

    key = jax.random.PRNGKey(0)
    kx, kp = jax.random.split(key)

    x = jax.random.normal(kx, (B, S, d_model), jnp.float32)

    # Padding mask: batch 0 fully valid, batch 1 valid for first 5 tokens.
    lengths = jnp.array([S, 5])
    pos = jnp.arange(S)[None, :]
    src_mask = (pos < lengths[:, None]).astype(jnp.float32)[:, None, :]   # (B,1,S)

    params = init_encoder_params(kp, d_model, ffn_hidden, n_layers)
    packed = pack_params(params, n_head)

    out = encoder_forward(x, src_mask, packed, n_head)
    out = jax.block_until_ready(out)
    assert out.shape == (B, S, d_model) and bool(jnp.all(jnp.isfinite(out)))

    # Correctness vs. pure-JAX f32 reference (loose tol: bf16 MXU matmuls).
    ref = encoder_reference(x, src_mask, params, n_head)
    max_err = float(jnp.max(jnp.abs(out - ref)))
    assert max_err < 5e-2, f"max abs err {max_err}"

    print("KERNEL_OK")
</pallas_src>

<mosaic_0001>
module attributes {stable_mosaic.version = 11 : i64} {
  func.func @encoder_stack_kernel(%arg0: i32, %arg1: i32, %arg2: memref<1x8x32xf32, #tpu.memory_space<vmem>>, %arg3: memref<1x1x8xf32, #tpu.memory_space<vmem>>, %arg4: memref<1x4x32x8xbf16, #tpu.memory_space<vmem>>, %arg5: memref<1x4x1x8xf32, #tpu.memory_space<vmem>>, %arg6: memref<1x4x32x8xbf16, #tpu.memory_space<vmem>>, %arg7: memref<1x4x1x8xf32, #tpu.memory_space<vmem>>, %arg8: memref<1x4x32x8xbf16, #tpu.memory_space<vmem>>, %arg9: memref<1x4x1x8xf32, #tpu.memory_space<vmem>>, %arg10: memref<1x4x8x32xbf16, #tpu.memory_space<vmem>>, %arg11: memref<1x1x32xf32, #tpu.memory_space<vmem>>, %arg12: memref<1x1x32xf32, #tpu.memory_space<vmem>>, %arg13: memref<1x1x32xf32, #tpu.memory_space<vmem>>, %arg14: memref<1x32x64xbf16, #tpu.memory_space<vmem>>, %arg15: memref<1x1x64xf32, #tpu.memory_space<vmem>>, %arg16: memref<1x64x32xbf16, #tpu.memory_space<vmem>>, %arg17: memref<1x1x32xf32, #tpu.memory_space<vmem>>, %arg18: memref<1x1x32xf32, #tpu.memory_space<vmem>>, %arg19: memref<1x1x32xf32, #tpu.memory_space<vmem>>, %arg20: memref<1x8x32xf32, #tpu.memory_space<vmem>>, %arg21: memref<8x32xf32, #tpu.memory_space<vmem>>) attributes {dimension_semantics = [#tpu.dimension_semantics<parallel>, #tpu.dimension_semantics<arbitrary>], iteration_bounds = array<i64: 2, 2>, scalar_prefetch = 0 : i64, scratch_operands = 1 : i64, tpu.core_type = #tpu.core_type<tc>, window_params = [{transform_indices = @transform_0, window_bounds = array<i64: 1, 8, 32>}, {transform_indices = @transform_1, window_bounds = array<i64: 1, 1, 8>}, {transform_indices = @transform_2, window_bounds = array<i64: 1, 4, 32, 8>}, {transform_indices = @transform_3, window_bounds = array<i64: 1, 4, 1, 8>}, {transform_indices = @transform_4, window_bounds = array<i64: 1, 4, 32, 8>}, {transform_indices = @transform_5, window_bounds = array<i64: 1, 4, 1, 8>}, {transform_indices = @transform_6, window_bounds = array<i64: 1, 4, 32, 8>}, {transform_indices = @transform_7, window_bounds = array<i64: 1, 4, 1, 8>}, {transform_indices = @transform_8, window_bounds = array<i64: 1, 4, 8, 32>}, {transform_indices = @transform_9, window_bounds = array<i64: 1, 1, 32>}, {transform_indices = @transform_10, window_bounds = array<i64: 1, 1, 32>}, {transform_indices = @transform_11, window_bounds = array<i64: 1, 1, 32>}, {transform_indices = @transform_12, window_bounds = array<i64: 1, 32, 64>}, {transform_indices = @transform_13, window_bounds = array<i64: 1, 1, 64>}, {transform_indices = @transform_14, window_bounds = array<i64: 1, 64, 32>}, {transform_indices = @transform_15, window_bounds = array<i64: 1, 1, 32>}, {transform_indices = @transform_16, window_bounds = array<i64: 1, 1, 32>}, {transform_indices = @transform_17, window_bounds = array<i64: 1, 1, 32>}, {transform_indices = @transform_18, window_bounds = array<i64: 1, 8, 32>}]} {
    %c0_i32 = arith.constant 0 : i32
    %0 = arith.cmpi eq, %arg1, %c0_i32 : i32
    %1 = arith.extui %0 : i1 to i32
    %c0_i32_0 = arith.constant 0 : i32
    %2 = arith.cmpi ne, %1, %c0_i32_0 : i32
    scf.if %2 {
      %c0_86 = arith.constant 0 : index
      %c0_87 = arith.constant 0 : index
      %c0_88 = arith.constant 0 : index
      %137 = vector.load %arg2[%c0_86, %c0_87, %c0_88] : memref<1x8x32xf32, #tpu.memory_space<vmem>>, vector<1x8x32xf32>
      %138 = vector.shape_cast %137 : vector<1x8x32xf32> to vector<8x32xf32>
      %c0_89 = arith.constant 0 : index
      %c0_90 = arith.constant 0 : index
      %139 = vector.load %arg21[%c0_89, %c0_90] : memref<8x32xf32, #tpu.memory_space<vmem>>, vector<8x32xf32>
      tpu.vector_store %arg21[%c0_89, %c0_90], %138 {strides = array<i32>} : memref<8x32xf32, #tpu.memory_space<vmem>>, vector<8x32xf32>,
    } else {
    }
    %c0 = arith.constant 0 : index
    %c0_1 = arith.constant 0 : index
    %3 = vector.load %arg21[%c0, %c0_1] : memref<8x32xf32, #tpu.memory_space<vmem>>, vector<8x32xf32>
    %c0_2 = arith.constant 0 : index
    %c0_3 = arith.constant 0 : index
    %c0_4 = arith.constant 0 : index
    %4 = vector.load %arg3[%c0_2, %c0_3, %c0_4] : memref<1x1x8xf32, #tpu.memory_space<vmem>>, vector<1x1x8xf32>
    %cst = arith.constant 1.000000e+00 : f32
    %5 = vector.broadcast %cst : f32 to vector<1x1x8xf32>
    %6 = arith.subf %4, %5 : vector<1x1x8xf32>
    %cst_5 = arith.constant 1.000000e+09 : f32
    %7 = vector.broadcast %cst_5 : f32 to vector<1x1x8xf32>
    %8 = arith.mulf %6, %7 : vector<1x1x8xf32>
    %9 = arith.truncf %3 : vector<8x32xf32> to vector<8x32xbf16>
    %10 = vector.shape_cast %9 : vector<8x32xbf16> to vector<1x8x32xbf16>
    %11 = vector.shape_cast %10 : vector<1x8x32xbf16> to vector<1x8x32xbf16>
    %12 = vector.broadcast %11 : vector<1x8x32xbf16> to vector<4x8x32xbf16>
    %c0_6 = arith.constant 0 : index
    %c0_7 = arith.constant 0 : index
    %c0_8 = arith.constant 0 : index
    %c0_9 = arith.constant 0 : index
    %13 = vector.load %arg4[%c0_6, %c0_7, %c0_8, %c0_9] : memref<1x4x32x8xbf16, #tpu.memory_space<vmem>>, vector<1x4x32x8xbf16>
    %14 = vector.shape_cast %13 : vector<1x4x32x8xbf16> to vector<4x32x8xbf16>
    "tpu.trace_start"() <{level = 10 : i32, message = "hsd,hde->hse"}> : () -> ()
    %cst_10 = arith.constant dense<0.000000e+00> : vector<4x8x8xf32>
    %15 = tpu.matmul %12, %14, %cst_10 {dimension_numbers = #tpu.dot_dimension_numbers<[2], [1], [1], [2], [0, 0, 0, 1, 1, 2], [0], [0]>} : vector<4x8x32xbf16>, vector<4x32x8xbf16>, vector<4x8x8xf32> -> vector<4x8x8xf32>
    "tpu.trace_stop"() : () -> ()
    %c0_11 = arith.constant 0 : index
    %c0_12 = arith.constant 0 : index
    %c0_13 = arith.constant 0 : index
    %c0_14 = arith.constant 0 : index
    %16 = vector.load %arg5[%c0_11, %c0_12, %c0_13, %c0_14] : memref<1x4x1x8xf32, #tpu.memory_space<vmem>>, vector<1x4x1x8xf32>
    %17 = vector.shape_cast %16 : vector<1x4x1x8xf32> to vector<4x1x8xf32>
    %18 = vector.broadcast %17 : vector<4x1x8xf32> to vector<4x8x8xf32>
    %19 = arith.addf %15, %18 : vector<4x8x8xf32>
    %c0_15 = arith.constant 0 : index
    %c0_16 = arith.constant 0 : index
    %c0_17 = arith.constant 0 : index
    %c0_18 = arith.constant 0 : index
    %20 = vector.load %arg6[%c0_15, %c0_16, %c0_17, %c0_18] : memref<1x4x32x8xbf16, #tpu.memory_space<vmem>>, vector<1x4x32x8xbf16>
    %21 = vector.shape_cast %20 : vector<1x4x32x8xbf16> to vector<4x32x8xbf16>
    "tpu.trace_start"() <{level = 10 : i32, message = "hsd,hde->hse"}> : () -> ()
    %cst_19 = arith.constant dense<0.000000e+00> : vector<4x8x8xf32>
    %22 = tpu.matmul %12, %21, %cst_19 {dimension_numbers = #tpu.dot_dimension_numbers<[2], [1], [1], [2], [0, 0, 0, 1, 1, 2], [0], [0]>} : vector<4x8x32xbf16>, vector<4x32x8xbf16>, vector<4x8x8xf32> -> vector<4x8x8xf32>
    "tpu.trace_stop"() : () -> ()
    %c0_20 = arith.constant 0 : index
    %c0_21 = arith.constant 0 : index
    %c0_22 = arith.constant 0 : index
    %c0_23 = arith.constant 0 : index
    %23 = vector.load %arg7[%c0_20, %c0_21, %c0_22, %c0_23] : memref<1x4x1x8xf32, #tpu.memory_space<vmem>>, vector<1x4x1x8xf32>
    %24 = vector.shape_cast %23 : vector<1x4x1x8xf32> to vector<4x1x8xf32>
    %25 = vector.broadcast %24 : vector<4x1x8xf32> to vector<4x8x8xf32>
    %26 = arith.addf %22, %25 : vector<4x8x8xf32>
    %c0_24 = arith.constant 0 : index
    %c0_25 = arith.constant 0 : index
    %c0_26 = arith.constant 0 : index
    %c0_27 = arith.constant 0 : index
    %27 = vector.load %arg8[%c0_24, %c0_25, %c0_26, %c0_27] : memref<1x4x32x8xbf16, #tpu.memory_space<vmem>>, vector<1x4x32x8xbf16>
    %28 = vector.shape_cast %27 : vector<1x4x32x8xbf16> to vector<4x32x8xbf16>
    "tpu.trace_start"() <{level = 10 : i32, message = "hsd,hde->hse"}> : () -> ()
    %cst_28 = arith.constant dense<0.000000e+00> : vector<4x8x8xf32>
    %29 = tpu.matmul %12, %28, %cst_28 {dimension_numbers = #tpu.dot_dimension_numbers<[2], [1], [1], [2], [0, 0, 0, 1, 1, 2], [0], [0]>} : vector<4x8x32xbf16>, vector<4x32x8xbf16>, vector<4x8x8xf32> -> vector<4x8x8xf32>
    "tpu.trace_stop"() : () -> ()
    %c0_29 = arith.constant 0 : index
    %c0_30 = arith.constant 0 : index
    %c0_31 = arith.constant 0 : index
    %c0_32 = arith.constant 0 : index
    %30 = vector.load %arg9[%c0_29, %c0_30, %c0_31, %c0_32] : memref<1x4x1x8xf32, #tpu.memory_space<vmem>>, vector<1x4x1x8xf32>
    %31 = vector.shape_cast %30 : vector<1x4x1x8xf32> to vector<4x1x8xf32>
    %32 = vector.broadcast %31 : vector<4x1x8xf32> to vector<4x8x8xf32>
    %33 = arith.addf %29, %32 : vector<4x8x8xf32>
    %34 = arith.truncf %19 : vector<4x8x8xf32> to vector<4x8x8xbf16>
    %35 = arith.truncf %26 : vector<4x8x8xf32> to vector<4x8x8xbf16>
    "tpu.trace_start"() <{level = 10 : i32, message = "hqd,hkd->hqk"}> : () -> ()
    %cst_33 = arith.constant dense<0.000000e+00> : vector<4x8x8xf32>
    %36 = tpu.matmul %34, %35, %cst_33 {dimension_numbers = #tpu.dot_dimension_numbers<[2], [2], [1], [1], [0, 0, 0, 1, 1, 1], [0], [0]>} : vector<4x8x8xbf16>, vector<4x8x8xbf16>, vector<4x8x8xf32> -> vector<4x8x8xf32>
    "tpu.trace_stop"() : () -> ()
    %37 = vector.broadcast %8 : vector<1x1x8xf32> to vector<4x8x8xf32>
    %38 = arith.addf %36, %37 : vector<4x8x8xf32>
    %cst_34 = arith.constant dense<0xFF800000> : vector<4x8xf32>
    %39 = vector.multi_reduction <maximumf>, %38, %cst_34 [2] : vector<4x8x8xf32> to vector<4x8xf32>
    %40 = vector.shape_cast %39 : vector<4x8xf32> to vector<4x8x1xf32>
    %41 = vector.broadcast %40 : vector<4x8x1xf32> to vector<4x8x8xf32>
    %42 = arith.subf %38, %41 : vector<4x8x8xf32>
    %43 = math.exp %42 : vector<4x8x8xf32>
    %cst_35 = arith.constant dense<0.000000e+00> : vector<4x8xf32>
    %44 = vector.multi_reduction <add>, %43, %cst_35 [2] : vector<4x8x8xf32> to vector<4x8xf32>
    %45 = vector.shape_cast %44 : vector<4x8xf32> to vector<4x8x1xf32>
    %46 = tpu.reciprocal %45 {approx = true} : vector<4x8x1xf32> -> vector<4x8x1xf32>
    %47 = vector.broadcast %46 : vector<4x8x1xf32> to vector<4x8x8xf32>
    %48 = arith.mulf %43, %47 : vector<4x8x8xf32>
    %49 = arith.truncf %48 : vector<4x8x8xf32> to vector<4x8x8xbf16>
    %50 = arith.truncf %33 : vector<4x8x8xf32> to vector<4x8x8xbf16>
    "tpu.trace_start"() <{level = 10 : i32, message = "hqk,hkd->hqd"}> : () -> ()
    %cst_36 = arith.constant dense<0.000000e+00> : vector<4x8x8xf32>
    %51 = tpu.matmul %49, %50, %cst_36 {dimension_numbers = #tpu.dot_dimension_numbers<[2], [1], [1], [2], [0, 0, 0, 1, 1, 2], [0], [0]>} : vector<4x8x8xbf16>, vector<4x8x8xbf16>, vector<4x8x8xf32> -> vector<4x8x8xf32>
    "tpu.trace_stop"() : () -> ()
    %52 = arith.truncf %51 : vector<4x8x8xf32> to vector<4x8x8xbf16>
    %c0_37 = arith.constant 0 : index
    %c0_38 = arith.constant 0 : index
    %c0_39 = arith.constant 0 : index
    %c0_40 = arith.constant 0 : index
    %53 = vector.load %arg10[%c0_37, %c0_38, %c0_39, %c0_40] : memref<1x4x8x32xbf16, #tpu.memory_space<vmem>>, vector<1x4x8x32xbf16>
    %54 = vector.shape_cast %53 : vector<1x4x8x32xbf16> to vector<4x8x32xbf16>
    "tpu.trace_start"() <{level = 10 : i32, message = "hsd,hde->hse"}> : () -> ()
    %cst_41 = arith.constant dense<0.000000e+00> : vector<4x8x32xf32>
    %55 = tpu.matmul %52, %54, %cst_41 {dimension_numbers = #tpu.dot_dimension_numbers<[2], [1], [1], [2], [0, 0, 0, 1, 1, 2], [0], [0]>} : vector<4x8x8xbf16>, vector<4x8x32xbf16>, vector<4x8x32xf32> -> vector<4x8x32xf32>
    "tpu.trace_stop"() : () -> ()
    %cst_42 = arith.constant dense<0.000000e+00> : vector<8x32xf32>
    %56 = vector.multi_reduction <add>, %55, %cst_42 [0] : vector<4x8x32xf32> to vector<8x32xf32>
    %c0_43 = arith.constant 0 : index
    %c0_44 = arith.constant 0 : index
    %c0_45 = arith.constant 0 : index
    %57 = vector.load %arg11[%c0_43, %c0_44, %c0_45] : memref<1x1x32xf32, #tpu.memory_space<vmem>>, vector<1x1x32xf32>
    %58 = vector.shape_cast %57 : vector<1x1x32xf32> to vector<1x32xf32>
    %59 = vector.broadcast %58 : vector<1x32xf32> to vector<8x32xf32>
    %60 = arith.addf %56, %59 : vector<8x32xf32>
    %61 = arith.addf %60, %3 : vector<8x32xf32>
    %c0_46 = arith.constant 0 : index
    %c0_47 = arith.constant 0 : index
    %c0_48 = arith.constant 0 : index
    %62 = vector.load %arg12[%c0_46, %c0_47, %c0_48] : memref<1x1x32xf32, #tpu.memory_space<vmem>>, vector<1x1x32xf32>
    %63 = vector.shape_cast %62 : vector<1x1x32xf32> to vector<1x32xf32>
    %c0_49 = arith.constant 0 : index
    %c0_50 = arith.constant 0 : index
    %c0_51 = arith.constant 0 : index
    %64 = vector.load %arg13[%c0_49, %c0_50, %c0_51] : memref<1x1x32xf32, #tpu.memory_space<vmem>>, vector<1x1x32xf32>
    %65 = vector.shape_cast %64 : vector<1x1x32xf32> to vector<1x32xf32>
    %cst_52 = arith.constant dense<0.000000e+00> : vector<8xf32>
    %66 = vector.multi_reduction <add>, %61, %cst_52 [1] : vector<8x32xf32> to vector<8xf32>
    %67 = vector.shape_cast %66 : vector<8xf32> to vector<8x1xf32>
    %cst_53 = arith.constant 3.200000e+01 : f32
    %68 = vector.broadcast %cst_53 : f32 to vector<8x1xf32>
    %69 = arith.divf %67, %68 : vector<8x1xf32>
    %70 = vector.broadcast %69 : vector<8x1xf32> to vector<8x32xf32>
    %71 = arith.subf %61, %70 : vector<8x32xf32>
    %72 = arith.mulf %71, %71 : vector<8x32xf32>
    %cst_54 = arith.constant dense<0.000000e+00> : vector<8xf32>
    %73 = vector.multi_reduction <add>, %72, %cst_54 [1] : vector<8x32xf32> to vector<8xf32>
    %74 = vector.shape_cast %73 : vector<8xf32> to vector<8x1xf32>
    %cst_55 = arith.constant 3.200000e+01 : f32
    %75 = vector.broadcast %cst_55 : f32 to vector<8x1xf32>
    %76 = arith.divf %74, %75 : vector<8x1xf32>
    %77 = vector.broadcast %69 : vector<8x1xf32> to vector<8x32xf32>
    %78 = arith.subf %61, %77 : vector<8x32xf32>
    %cst_56 = arith.constant 9.99999974E-6 : f32
    %79 = vector.broadcast %cst_56 : f32 to vector<8x1xf32>
    %80 = arith.addf %76, %79 : vector<8x1xf32>
    %81 = math.rsqrt %80 : vector<8x1xf32>
    %82 = vector.broadcast %81 : vector<8x1xf32> to vector<8x32xf32>
    %83 = arith.mulf %78, %82 : vector<8x32xf32>
    %84 = vector.broadcast %63 : vector<1x32xf32> to vector<8x32xf32>
    %85 = arith.mulf %83, %84 : vector<8x32xf32>
    %86 = vector.broadcast %65 : vector<1x32xf32> to vector<8x32xf32>
    %87 = arith.addf %85, %86 : vector<8x32xf32>
    %88 = arith.truncf %87 : vector<8x32xf32> to vector<8x32xbf16>
    %c0_57 = arith.constant 0 : index
    %c0_58 = arith.constant 0 : index
    %c0_59 = arith.constant 0 : index
    %89 = vector.load %arg14[%c0_57, %c0_58, %c0_59] : memref<1x32x64xbf16, #tpu.memory_space<vmem>>, vector<1x32x64xbf16>
    %90 = vector.shape_cast %89 : vector<1x32x64xbf16> to vector<32x64xbf16>
    %cst_60 = arith.constant dense<0.000000e+00> : vector<8x64xf32>
    %91 = tpu.matmul %88, %90, %cst_60 {dimension_numbers = #tpu.dot_dimension_numbers<[1], [0], [0], [1], [0, 0, 1, 1], [], []>} : vector<8x32xbf16>, vector<32x64xbf16>, vector<8x64xf32> -> vector<8x64xf32>
    %c0_61 = arith.constant 0 : index
    %c0_62 = arith.constant 0 : index
    %c0_63 = arith.constant 0 : index
    %92 = vector.load %arg15[%c0_61, %c0_62, %c0_63] : memref<1x1x64xf32, #tpu.memory_space<vmem>>, vector<1x1x64xf32>
    %93 = vector.shape_cast %92 : vector<1x1x64xf32> to vector<1x64xf32>
    %94 = vector.broadcast %93 : vector<1x64xf32> to vector<8x64xf32>
    %95 = arith.addf %91, %94 : vector<8x64xf32>
    %cst_64 = arith.constant 0.000000e+00 : f32
    %96 = vector.broadcast %cst_64 : f32 to vector<8x64xf32>
    %97 = arith.maximumf %95, %96 : vector<8x64xf32>
    %98 = arith.truncf %97 : vector<8x64xf32> to vector<8x64xbf16>
    %c0_65 = arith.constant 0 : index
    %c0_66 = arith.constant 0 : index
    %c0_67 = arith.constant 0 : index
    %99 = vector.load %arg16[%c0_65, %c0_66, %c0_67] : memref<1x64x32xbf16, #tpu.memory_space<vmem>>, vector<1x64x32xbf16>
    %100 = vector.shape_cast %99 : vector<1x64x32xbf16> to vector<64x32xbf16>
    %cst_68 = arith.constant dense<0.000000e+00> : vector<8x32xf32>
    %101 = tpu.matmul %98, %100, %cst_68 {dimension_numbers = #tpu.dot_dimension_numbers<[1], [0], [0], [1], [0, 0, 1, 1], [], []>} : vector<8x64xbf16>, vector<64x32xbf16>, vector<8x32xf32> -> vector<8x32xf32>
    %c0_69 = arith.constant 0 : index
    %c0_70 = arith.constant 0 : index
    %c0_71 = arith.constant 0 : index
    %102 = vector.load %arg17[%c0_69, %c0_70, %c0_71] : memref<1x1x32xf32, #tpu.memory_space<vmem>>, vector<1x1x32xf32>
    %103 = vector.shape_cast %102 : vector<1x1x32xf32> to vector<1x32xf32>
    %104 = vector.broadcast %103 : vector<1x32xf32> to vector<8x32xf32>
    %105 = arith.addf %101, %104 : vector<8x32xf32>
    %106 = arith.addf %105, %87 : vector<8x32xf32>
    %c0_72 = arith.constant 0 : index
    %c0_73 = arith.constant 0 : index
    %c0_74 = arith.constant 0 : index
    %107 = vector.load %arg18[%c0_72, %c0_73, %c0_74] : memref<1x1x32xf32, #tpu.memory_space<vmem>>, vector<1x1x32xf32>
    %108 = vector.shape_cast %107 : vector<1x1x32xf32> to vector<1x32xf32>
    %c0_75 = arith.constant 0 : index
    %c0_76 = arith.constant 0 : index
    %c0_77 = arith.constant 0 : index
    %109 = vector.load %arg19[%c0_75, %c0_76, %c0_77] : memref<1x1x32xf32, #tpu.memory_space<vmem>>, vector<1x1x32xf32>
    %110 = vector.shape_cast %109 : vector<1x1x32xf32> to vector<1x32xf32>
    %cst_78 = arith.constant dense<0.000000e+00> : vector<8xf32>
    %111 = vector.multi_reduction <add>, %106, %cst_78 [1] : vector<8x32xf32> to vector<8xf32>
    %112 = vector.shape_cast %111 : vector<8xf32> to vector<8x1xf32>
    %cst_79 = arith.constant 3.200000e+01 : f32
    %113 = vector.broadcast %cst_79 : f32 to vector<8x1xf32>
    %114 = arith.divf %112, %113 : vector<8x1xf32>
    %115 = vector.broadcast %114 : vector<8x1xf32> to vector<8x32xf32>
    %116 = arith.subf %106, %115 : vector<8x32xf32>
    %117 = arith.mulf %116, %116 : vector<8x32xf32>
    %cst_80 = arith.constant dense<0.000000e+00> : vector<8xf32>
    %118 = vector.multi_reduction <add>, %117, %cst_80 [1] : vector<8x32xf32> to vector<8xf32>
    %119 = vector.shape_cast %118 : vector<8xf32> to vector<8x1xf32>
    %cst_81 = arith.constant 3.200000e+01 : f32
    %120 = vector.broadcast %cst_81 : f32 to vector<8x1xf32>
    %121 = arith.divf %119, %120 : vector<8x1xf32>
    %122 = vector.broadcast %114 : vector<8x1xf32> to vector<8x32xf32>
    %123 = arith.subf %106, %122 : vector<8x32xf32>
    %cst_82 = arith.constant 9.99999974E-6 : f32
    %124 = vector.broadcast %cst_82 : f32 to vector<8x1xf32>
    %125 = arith.addf %121, %124 : vector<8x1xf32>
    %126 = math.rsqrt %125 : vector<8x1xf32>
    %127 = vector.broadcast %126 : vector<8x1xf32> to vector<8x32xf32>
    %128 = arith.mulf %123, %127 : vector<8x32xf32>
    %129 = vector.broadcast %108 : vector<1x32xf32> to vector<8x32xf32>
    %130 = arith.mulf %128, %129 : vector<8x32xf32>
    %131 = vector.broadcast %110 : vector<1x32xf32> to vector<8x32xf32>
    %132 = arith.addf %130, %131 : vector<8x32xf32>
    %c0_83 = arith.constant 0 : index
    %c0_84 = arith.constant 0 : index
    %133 = vector.load %arg21[%c0_83, %c0_84] : memref<8x32xf32, #tpu.memory_space<vmem>>, vector<8x32xf32>
    tpu.vector_store %arg21[%c0_83, %c0_84], %132 {strides = array<i32>} : memref<8x32xf32, #tpu.memory_space<vmem>>, vector<8x32xf32>,
    %c1_i32 = arith.constant 1 : i32
    %134 = arith.cmpi eq, %arg1, %c1_i32 : i32
    %135 = arith.extui %134 : i1 to i32
    %c0_i32_85 = arith.constant 0 : i32
    %136 = arith.cmpi ne, %135, %c0_i32_85 : i32
    scf.if %136 {
      %c0_86 = arith.constant 0 : index
      %c0_87 = arith.constant 0 : index
      %c0_88 = arith.constant 0 : index
      %137 = vector.load %arg20[%c0_86, %c0_87, %c0_88] : memref<1x8x32xf32, #tpu.memory_space<vmem>>, vector<1x8x32xf32>
      %138 = vector.shape_cast %137 : vector<1x8x32xf32> to vector<8x32xf32>
      %139 = vector.shape_cast %132 : vector<8x32xf32> to vector<1x8x32xf32>
      tpu.vector_store %arg20[%c0_86, %c0_87, %c0_88], %139 {strides = array<i32>} : memref<1x8x32xf32, #tpu.memory_space<vmem>>, vector<1x8x32xf32>,
    } else {
    }
    return
  }
  func.func @transform_0(%arg0: i32, %arg1: i32) -> (i32, i32, i32) {
    %c0_i32 = arith.constant 0 : i32
    %c0_i32_0 = arith.constant 0 : i32
    %c0_i32_1 = arith.constant 0 : i32
    return %arg0, %c0_i32, %c0_i32_0 : i32, i32, i32
  }
  func.func @transform_1(%arg0: i32, %arg1: i32) -> (i32, i32, i32) {
    %c0_i32 = arith.constant 0 : i32
    %c0_i32_0 = arith.constant 0 : i32
    %c0_i32_1 = arith.constant 0 : i32
    return %arg0, %c0_i32, %c0_i32_0 : i32, i32, i32
  }
  func.func @transform_2(%arg0: i32, %arg1: i32) -> (i32, i32, i32, i32) {
    %c0_i32 = arith.constant 0 : i32
    %c0_i32_0 = arith.constant 0 : i32
    %c0_i32_1 = arith.constant 0 : i32
    %c0_i32_2 = arith.constant 0 : i32
    return %arg1, %c0_i32, %c0_i32_0, %c0_i32_1 : i32, i32, i32, i32
  }
  func.func @transform_3(%arg0: i32, %arg1: i32) -> (i32, i32, i32, i32) {
    %c0_i32 = arith.constant 0 : i32
    %c0_i32_0 = arith.constant 0 : i32
    %c0_i32_1 = arith.constant 0 : i32
    %c0_i32_2 = arith.constant 0 : i32
    return %arg1, %c0_i32, %c0_i32_0, %c0_i32_1 : i32, i32, i32, i32
  }
  func.func @transform_4(%arg0: i32, %arg1: i32) -> (i32, i32, i32, i32) {
    %c0_i32 = arith.constant 0 : i32
    %c0_i32_0 = arith.constant 0 : i32
    %c0_i32_1 = arith.constant 0 : i32
    %c0_i32_2 = arith.constant 0 : i32
    return %arg1, %c0_i32, %c0_i32_0, %c0_i32_1 : i32, i32, i32, i32
  }
  func.func @transform_5(%arg0: i32, %arg1: i32) -> (i32, i32, i32, i32) {
    %c0_i32 = arith.constant 0 : i32
    %c0_i32_0 = arith.constant 0 : i32
    %c0_i32_1 = arith.constant 0 : i32
    %c0_i32_2 = arith.constant 0 : i32
    return %arg1, %c0_i32, %c0_i32_0, %c0_i32_1 : i32, i32, i32, i32
  }
  func.func @transform_6(%arg0: i32, %arg1: i32) -> (i32, i32, i32, i32) {
    %c0_i32 = arith.constant 0 : i32
    %c0_i32_0 = arith.constant 0 : i32
    %c0_i32_1 = arith.constant 0 : i32
    %c0_i32_2 = arith.constant 0 : i32
    return %arg1, %c0_i32, %c0_i32_0, %c0_i32_1 : i32, i32, i32, i32
  }
  func.func @transform_7(%arg0: i32, %arg1: i32) -> (i32, i32, i32, i32) {
    %c0_i32 = arith.constant 0 : i32
    %c0_i32_0 = arith.constant 0 : i32
    %c0_i32_1 = arith.constant 0 : i32
    %c0_i32_2 = arith.constant 0 : i32
    return %arg1, %c0_i32, %c0_i32_0, %c0_i32_1 : i32, i32, i32, i32
  }
  func.func @transform_8(%arg0: i32, %arg1: i32) -> (i32, i32, i32, i32) {
    %c0_i32 = arith.constant 0 : i32
    %c0_i32_0 = arith.constant 0 : i32
    %c0_i32_1 = arith.constant 0 : i32
    %c0_i32_2 = arith.constant 0 : i32
    return %arg1, %c0_i32, %c0_i32_0, %c0_i32_1 : i32, i32, i32, i32
  }
  func.func @transform_9(%arg0: i32, %arg1: i32) -> (i32, i32, i32) {
    %c0_i32 = arith.constant 0 : i32
    %c0_i32_0 = arith.constant 0 : i32
    %c0_i32_1 = arith.constant 0 : i32
    return %arg1, %c0_i32, %c0_i32_0 : i32, i32, i32
  }
  func.func @transform_10(%arg0: i32, %arg1: i32) -> (i32, i32, i32) {
    %c0_i32 = arith.constant 0 : i32
    %c0_i32_0 = arith.constant 0 : i32
    %c0_i32_1 = arith.constant 0 : i32
    return %arg1, %c0_i32, %c0_i32_0 : i32, i32, i32
  }
  func.func @transform_11(%arg0: i32, %arg1: i32) -> (i32, i32, i32) {
    %c0_i32 = arith.constant 0 : i32
    %c0_i32_0 = arith.constant 0 : i32
    %c0_i32_1 = arith.constant 0 : i32
    return %arg1, %c0_i32, %c0_i32_0 : i32, i32, i32
  }
  func.func @transform_12(%arg0: i32, %arg1: i32) -> (i32, i32, i32) {
    %c0_i32 = arith.constant 0 : i32
    %c0_i32_0 = arith.constant 0 : i32
    %c0_i32_1 = arith.constant 0 : i32
    return %arg1, %c0_i32, %c0_i32_0 : i32, i32, i32
  }
  func.func @transform_13(%arg0: i32, %arg1: i32) -> (i32, i32, i32) {
    %c0_i32 = arith.constant 0 : i32
    %c0_i32_0 = arith.constant 0 : i32
    %c0_i32_1 = arith.constant 0 : i32
    return %arg1, %c0_i32, %c0_i32_0 : i32, i32, i32
  }
  func.func @transform_14(%arg0: i32, %arg1: i32) -> (i32, i32, i32) {
    %c0_i32 = arith.constant 0 : i32
    %c0_i32_0 = arith.constant 0 : i32
    %c0_i32_1 = arith.constant 0 : i32
    return %arg1, %c0_i32, %c0_i32_0 : i32, i32, i32
  }
  func.func @transform_15(%arg0: i32, %arg1: i32) -> (i32, i32, i32) {
    %c0_i32 = arith.constant 0 : i32
    %c0_i32_0 = arith.constant 0 : i32
    %c0_i32_1 = arith.constant 0 : i32
    return %arg1, %c0_i32, %c0_i32_0 : i32, i32, i32
  }
  func.func @transform_16(%arg0: i32, %arg1: i32) -> (i32, i32, i32) {
    %c0_i32 = arith.constant 0 : i32
    %c0_i32_0 = arith.constant 0 : i32
    %c0_i32_1 = arith.constant 0 : i32
    return %arg1, %c0_i32, %c0_i32_0 : i32, i32, i32
  }
  func.func @transform_17(%arg0: i32, %arg1: i32) -> (i32, i32, i32) {
    %c0_i32 = arith.constant 0 : i32
    %c0_i32_0 = arith.constant 0 : i32
    %c0_i32_1 = arith.constant 0 : i32
    return %arg1, %c0_i32, %c0_i32_0 : i32, i32, i32
  }
  func.func @transform_18(%arg0: i32, %arg1: i32) -> (i32, i32, i32) {
    %c0_i32 = arith.constant 0 : i32
    %c0_i32_0 = arith.constant 0 : i32
    %c0_i32_1 = arith.constant 0 : i32
    return %arg0, %c0_i32, %c0_i32_0 : i32, i32, i32
  }
}

</mosaic_0001>

<llo_original>
// kernel: tpu_custom_call.1
$region0: #{tpu_custom_call.1}
  #allocation0 [shape = 'u32[]', space=smem, size = 0x4, offset = 0x4, fixed_abs, tag = 'smem constant byte address 0x4 - core index']
  #allocation1 [shape = 'u32[72,128]{1,0:T(1,128)}', space=vmem, size = 0x9000, scoped, tag = 'internal scratch']
  #allocation2 [shape = 'f32[8,32]{1,0:T(8,128)}', space=vmem, size = 0x1000, scoped, tag = 'scratch operand']
  %s0 = inlined_call_operand.vmem [shape: f32[2,8,32], index: 0, kind: input, shape index: {}]
  %s1 = inlined_call_operand.vmem [shape: f32[2,1,8], index: 1, kind: input, shape index: {}]
  %s2 = inlined_call_operand.vmem [shape: bf16[2,4,32,8], index: 2, kind: input, shape index: {}]
  %s3 = inlined_call_operand.vmem [shape: f32[2,4,1,8], index: 3, kind: input, shape index: {}]
  %s4 = inlined_call_operand.vmem [shape: bf16[2,4,32,8], index: 4, kind: input, shape index: {}]
  %s5 = inlined_call_operand.vmem [shape: f32[2,4,1,8], index: 5, kind: input, shape index: {}]
  %s6 = inlined_call_operand.vmem [shape: bf16[2,4,32,8], index: 6, kind: input, shape index: {}]
  %s7 = inlined_call_operand.vmem [shape: f32[2,4,1,8], index: 7, kind: input, shape index: {}]
  %s8 = inlined_call_operand.vmem [shape: bf16[2,4,8,32], index: 8, kind: input, shape index: {}]
  %s9 = inlined_call_operand.vmem [shape: f32[2,1,32], index: 9, kind: input, shape index: {}]
  %s10 = inlined_call_operand.vmem [shape: f32[2,1,32], index: 10, kind: input, shape index: {}]
  %s11 = inlined_call_operand.vmem [shape: f32[2,1,32], index: 11, kind: input, shape index: {}]
  %s12 = inlined_call_operand.vmem [shape: bf16[2,32,64], index: 12, kind: input, shape index: {}]
  %s13 = inlined_call_operand.vmem [shape: f32[2,1,64], index: 13, kind: input, shape index: {}]
  %s14 = inlined_call_operand.vmem [shape: bf16[2,64,32], index: 14, kind: input, shape index: {}]
  %s15 = inlined_call_operand.vmem [shape: f32[2,1,32], index: 15, kind: input, shape index: {}]
  %s16 = inlined_call_operand.vmem [shape: f32[2,1,32], index: 16, kind: input, shape index: {}]
  %s17 = inlined_call_operand.vmem [shape: f32[2,1,32], index: 17, kind: input, shape index: {}]
  %s18 = inlined_call_operand.hbm [shape: f32[2,8,32], index: 18, kind: output, shape index: {}]
  %s19 = sld [smem:[#allocation0]]
  $region113: #{tpu_custom_call.1} parent=0
    _
  %s21 = ssub.s32 1, %s19
  %s22 = scalar_select 0, %s21, %s19
  $region1: #{tpu_custom_call.1} parent=0
    #allocation3 [shape = 'u8[8192]{0}', space=vmem, size = 0x2000, scoped, tag = 'output window, operand 0']
    #allocation4 [shape = 's32[2]{0}', space=sflag, size = 0x8, scoped, tag = 'scoped memory for tpu_custom_call.1']
    %23 = vsyncpa [#allocation4], 0
    %s24 = scalar_lea.sflag [#allocation4], 1
    %25 = vsyncpa %s24, 0
    loop: start=0, step=1, limit=6
    $region2: #{tpu_custom_call.1} parent=1 // loop_pre_header
      _
    $region3: #{tpu_custom_call.1} parent=1 // loop_header
      %s27 = sphi 0, %s31
      %p28 = scmp.ge.s32.totalorder %s27, 6
      %s34 = sphi 0, %s46
      %s35 = sphi 0, %s42
      %s36 = sphi 0, %s34
      %s37 = sphi 0, %s35
      %s38 = sphi 0, %s36
      %s39 = sphi 0, %s37
      %s49 = sphi 0, %s51
      %s52 = sphi 0, %s49
      %s53 = sphi 0, %s52
      %s69 = sphi 0, %s53
      %s75 = sphi 0, %s77
      %s78 = sphi 0, %s75
      %s79 = sphi 0, %s78
      %s95 = sphi 0, %s79
      %s101 = sphi 0, %s103
      %s104 = sphi 0, %s101
      %s105 = sphi 0, %s104
      %s121 = sphi 0, %s105
      %s127 = sphi 0, %s129
      %s130 = sphi 0, %s127
      %s131 = sphi 0, %s130
      %s147 = sphi 0, %s131
      %s153 = sphi 0, %s155
      %s156 = sphi 0, %s153
      %s157 = sphi 0, %s156
      %s173 = sphi 0, %s157
      %s179 = sphi 0, %s181
      %s182 = sphi 0, %s179
      %s183 = sphi 0, %s182
      %s199 = sphi 0, %s183
      %s205 = sphi 0, %s207
      %s208 = sphi 0, %s205
      %s209 = sphi 0, %s208
      %s225 = sphi 0, %s209
      %s231 = sphi 0, %s233
      %s234 = sphi 0, %s231
      %s235 = sphi 0, %s234
      %s251 = sphi 0, %s235
      %s257 = sphi 0, %s259
      %s260 = sphi 0, %s257
      %s261 = sphi 0, %s260
      %s277 = sphi 0, %s261
      %s283 = sphi 0, %s285
      %s286 = sphi 0, %s283
      %s287 = sphi 0, %s286
      %s303 = sphi 0, %s287
      %s309 = sphi 0, %s311
      %s312 = sphi 0, %s309
      %s313 = sphi 0, %s312
      %s329 = sphi 0, %s313
      %s335 = sphi 0, %s337
      %s338 = sphi 0, %s335
      %s339 = sphi 0, %s338
      %s355 = sphi 0, %s339
      %s361 = sphi 0, %s363
      %s364 = sphi 0, %s361
      %s365 = sphi 0, %s364
      %s381 = sphi 0, %s365
      %s387 = sphi 0, %s389
      %s390 = sphi 0, %s387
      %s391 = sphi 0, %s390
      %s407 = sphi 0, %s391
      %s413 = sphi 0, %s415
      %s416 = sphi 0, %s413
      %s417 = sphi 0, %s416
      %s433 = sphi 0, %s417
      %s439 = sphi 0, %s441
      %s442 = sphi 0, %s439
      %s443 = sphi 0, %s442
      %s459 = sphi 0, %s443
      %s465 = sphi 0, %s467
      %s468 = sphi 0, %s465
      %s469 = sphi 0, %s468
      %s485 = sphi 0, %s469
      %s491 = sphi 0, %s493
      %s494 = sphi 0, %s491
      %s495 = sphi 0, %s494
      %s511 = sphi 0, %s495
      %s517 = sphi 0, %s519
      %s520 = sphi 0, %s517
      %s521 = sphi 0, %s520
      %s537 = sphi 0, %s521
    $region4: #{tpu_custom_call.1} parent=1 // loop_header_branch
      %30 = sbr.rel (%p28) target = $region8
    $region5: #{tpu_custom_call.1} parent=1 // loop_body
      %s32 = ssub.s32 %s27, 1
      %s33 = ssub.s32 %s27, 2
      %s40 = sadd.s32 1, %s35
      %p41 = scmp.ge.s32.totalorder %s40, 2
      %s42 = scalar_select %p41, 0, %s40
      %s43 = sadd.s32 1, %s34
      %s44 = scalar_select %p41, %s43, %s34
      %p45 = scmp.ge.s32.totalorder %s44, 2
      %s46 = scalar_select %p45, 0, %s44
      %s47 = ssub.s32 %s34, %s46
      %p48 = scmp.eq.s32.totalorder %s47, 0
      %s50 = sadd.s32 %s49, 1
      %s51 = scalar_select %p48, %s49, %s50
      %p54 = pneg %p48
      %p55 = scmp.eq.s32.totalorder %s27, 3
      %p56 = por %p54, %p55
      %p57 = scmp.ne.s32.totalorder %s49, %s52
      %p58 = scmp.eq.s32.totalorder %s27, 0
      %p59 = por %p57, %p58
      %p60 = scmp.ne.s32.totalorder %s49, %s52
      %p61 = scmp.eq.s32.totalorder %s32, 3
      %p62 = por %p60, %p61
      %p63 = scmp.ne.s32.totalorder %s52, %s53
      %p64 = scmp.eq.s32.totalorder %s32, 0
      %p65 = por %p63, %p64
      %p66 = scmp.ne.s32.totalorder %s52, %s53
      %p67 = scmp.eq.s32.totalorder %s33, 3
      %p68 = por %p66, %p67
      %p70 = scmp.ne.s32.totalorder %s53, %s69
      %p71 = scmp.eq.s32.totalorder %s33, 0
      %p72 = por %p70, %p71
      %s73 = ssub.s32 %s34, %s46
      %p74 = scmp.eq.s32.totalorder %s73, 0
      %s76 = sadd.s32 %s75, 1
      %s77 = scalar_select %p74, %s75, %s76
      %p80 = pneg %p74
      %p81 = scmp.eq.s32.totalorder %s27, 3
      %p82 = por %p80, %p81
      %p83 = scmp.ne.s32.totalorder %s75, %s78
      %p84 = scmp.eq.s32.totalorder %s27, 0
      %p85 = por %p83, %p84
      %p86 = scmp.ne.s32.totalorder %s75, %s78
      %p87 = scmp.eq.s32.totalorder %s32, 3
      %p88 = por %p86, %p87
      %p89 = scmp.ne.s32.totalorder %s78, %s79
      %p90 = scmp.eq.s32.totalorder %s32, 0
      %p91 = por %p89, %p90
      %p92 = scmp.ne.s32.totalorder %s78, %s79
      %p93 = scmp.eq.s32.totalorder %s33, 3
      %p94 = por %p92, %p93
      %p96 = scmp.ne.s32.totalorder %s79, %s95
      %p97 = scmp.eq.s32.totalorder %s33, 0
      %p98 = por %p96, %p97
      %s99 = ssub.s32 %s35, %s42
      %p100 = scmp.eq.s32.totalorder %s99, 0
      %s102 = sadd.s32 %s101, 1
      %s103 = scalar_select %p100, %s101, %s102
      %p106 = pneg %p100
      %p107 = scmp.eq.s32.totalorder %s27, 3
      %p108 = por %p106, %p107
      %p109 = scmp.ne.s32.totalorder %s101, %s104
      %p110 = scmp.eq.s32.totalorder %s27, 0
      %p111 = por %p109, %p110
      %p112 = scmp.ne.s32.totalorder %s101, %s104
      %p113 = scmp.eq.s32.totalorder %s32, 3
      %p114 = por %p112, %p113
      %p115 = scmp.ne.s32.totalorder %s104, %s105
      %p116 = scmp.eq.s32.totalorder %s32, 0
      %p117 = por %p115, %p116
      %p118 = scmp.ne.s32.totalorder %s104, %s105
      %p119 = scmp.eq.s32.totalorder %s33, 3
      %p120 = por %p118, %p119
      %p122 = scmp.ne.s32.totalorder %s105, %s121
      %p123 = scmp.eq.s32.totalorder %s33, 0
      %p124 = por %p122, %p123
      %s125 = ssub.s32 %s35, %s42
      %p126 = scmp.eq.s32.totalorder %s125, 0
      %s128 = sadd.s32 %s127, 1
      %s129 = scalar_select %p126, %s127, %s128
      %p132 = pneg %p126
      %p133 = scmp.eq.s32.totalorder %s27, 3
      %p134 = por %p132, %p133
      %p135 = scmp.ne.s32.totalorder %s127, %s130
      %p136 = scmp.eq.s32.totalorder %s27, 0
      %p137 = por %p135, %p136
      %p138 = scmp.ne.s32.totalorder %s127, %s130
      %p139 = scmp.eq.s32.totalorder %s32, 3
      %p140 = por %p138, %p139
      %p141 = scmp.ne.s32.totalorder %s130, %s131
      %p142 = scmp.eq.s32.totalorder %s32, 0
      %p143 = por %p141, %p142
      %p144 = scmp.ne.s32.totalorder %s130, %s131
      %p145 = scmp.eq.s32.totalorder %s33, 3
      %p146 = por %p144, %p145
      %p148 = scmp.ne.s32.totalorder %s131, %s147
      %p149 = scmp.eq.s32.totalorder %s33, 0
      %p150 = por %p148, %p149
      %s151 = ssub.s32 %s35, %s42
      %p152 = scmp.eq.s32.totalorder %s151, 0
      %s154 = sadd.s32 %s153, 1
      %s155 = scalar_select %p152, %s153, %s154
      %p158 = pneg %p152
      %p159 = scmp.eq.s32.totalorder %s27, 3
      %p160 = por %p158, %p159
      %p161 = scmp.ne.s32.totalorder %s153, %s156
      %p162 = scmp.eq.s32.totalorder %s27, 0
      %p163 = por %p161, %p162
      %p164 = scmp.ne.s32.totalorder %s153, %s156
      %p165 = scmp.eq.s32.totalorder %s32, 3
      %p166 = por %p164, %p165
      %p167 = scmp.ne.s32.totalorder %s156, %s157
      %p168 = scmp.eq.s32.totalorder %s32, 0
      %p169 = por %p167, %p168
      %p170 = scmp.ne.s32.totalorder %s156, %s157
      %p171 = scmp.eq.s32.totalorder %s33, 3
      %p172 = por %p170, %p171
      %p174 = scmp.ne.s32.totalorder %s157, %s173
      %p175 = scmp.eq.s32.totalorder %s33, 0
      %p176 = por %p174, %p175
      %s177 = ssub.s32 %s35, %s42
      %p178 = scmp.eq.s32.totalorder %s177, 0
      %s180 = sadd.s32 %s179, 1
      %s181 = scalar_select %p178, %s179, %s180
      %p184 = pneg %p178
      %p185 = scmp.eq.s32.totalorder %s27, 3
      %p186 = por %p184, %p185
      %p187 = scmp.ne.s32.totalorder %s179, %s182
      %p188 = scmp.eq.s32.totalorder %s27, 0
      %p189 = por %p187, %p188
      %p190 = scmp.ne.s32.totalorder %s179, %s182
      %p191 = scmp.eq.s32.totalorder %s32, 3
      %p192 = por %p190, %p191
      %p193 = scmp.ne.s32.totalorder %s182, %s183
      %p194 = scmp.eq.s32.totalorder %s32, 0
      %p195 = por %p193, %p194
      %p196 = scmp.ne.s32.totalorder %s182, %s183
      %p197 = scmp.eq.s32.totalorder %s33, 3
      %p198 = por %p196, %p197
      %p200 = scmp.ne.s32.totalorder %s183, %s199
      %p201 = scmp.eq.s32.totalorder %s33, 0
      %p202 = por %p200, %p201
      %s203 = ssub.s32 %s35, %s42
      %p204 = scmp.eq.s32.totalorder %s203, 0
      %s206 = sadd.s32 %s205, 1
      %s207 = scalar_select %p204, %s205, %s206
      %p210 = pneg %p204
      %p211 = scmp.eq.s32.totalorder %s27, 3
      %p212 = por %p210, %p211
      %p213 = scmp.ne.s32.totalorder %s205, %s208
      %p214 = scmp.eq.s32.totalorder %s27, 0
      %p215 = por %p213, %p214
      %p216 = scmp.ne.s32.totalorder %s205, %s208
      %p217 = scmp.eq.s32.totalorder %s32, 3
      %p218 = por %p216, %p217
      %p219 = scmp.ne.s32.totalorder %s208, %s209
      %p220 = scmp.eq.s32.totalorder %s32, 0
      %p221 = por %p219, %p220
      %p222 = scmp.ne.s32.totalorder %s208, %s209
      %p223 = scmp.eq.s32.totalorder %s33, 3
      %p224 = por %p222, %p223
      %p226 = scmp.ne.s32.totalorder %s209, %s225
      %p227 = scmp.eq.s32.totalorder %s33, 0
      %p228 = por %p226, %p227
      %s229 = ssub.s32 %s35, %s42
      %p230 = scmp.eq.s32.totalorder %s229, 0
      %s232 = sadd.s32 %s231, 1
      %s233 = scalar_select %p230, %s231, %s232
      %p236 = pneg %p230
      %p237 = scmp.eq.s32.totalorder %s27, 3
      %p238 = por %p236, %p237
      %p239 = scmp.ne.s32.totalorder %s231, %s234
      %p240 = scmp.eq.s32.totalorder %s27, 0
      %p241 = por %p239, %p240
      %p242 = scmp.ne.s32.totalorder %s231, %s234
      %p243 = scmp.eq.s32.totalorder %s32, 3
      %p244 = por %p242, %p243
      %p245 = scmp.ne.s32.totalorder %s234, %s235
      %p246 = scmp.eq.s32.totalorder %s32, 0
      %p247 = por %p245, %p246
      %p248 = scmp.ne.s32.totalorder %s234, %s235
      %p249 = scmp.eq.s32.totalorder %s33, 3
      %p250 = por %p248, %p249
      %p252 = scmp.ne.s32.totalorder %s235, %s251
      %p253 = scmp.eq.s32.totalorder %s33, 0
      %p254 = por %p252, %p253
      %s255 = ssub.s32 %s35, %s42
      %p256 = scmp.eq.s32.totalorder %s255, 0
      %s258 = sadd.s32 %s257, 1
      %s259 = scalar_select %p256, %s257, %s258
      %p262 = pneg %p256
      %p263 = scmp.eq.s32.totalorder %s27, 3
      %p264 = por %p262, %p263
      %p265 = scmp.ne.s32.totalorder %s257, %s260
      %p266 = scmp.eq.s32.totalorder %s27, 0
      %p267 = por %p265, %p266
      %p268 = scmp.ne.s32.totalorder %s257, %s260
      %p269 = scmp.eq.s32.totalorder %s32, 3
      %p270 = por %p268, %p269
      %p271 = scmp.ne.s32.totalorder %s260, %s261
      %p272 = scmp.eq.s32.totalorder %s32, 0
      %p273 = por %p271, %p272
      %p274 = scmp.ne.s32.totalorder %s260, %s261
      %p275 = scmp.eq.s32.totalorder %s33, 3
      %p276 = por %p274, %p275
      %p278 = scmp.ne.s32.totalorder %s261, %s277
      %p279 = scmp.eq.s32.totalorder %s33, 0
      %p280 = por %p278, %p279
      %s281 = ssub.s32 %s35, %s42
      %p282 = scmp.eq.s32.totalorder %s281, 0
      %s284 = sadd.s32 %s283, 1
      %s285 = scalar_select %p282, %s283, %s284
      %p288 = pneg %p282
      %p289 = scmp.eq.s32.totalorder %s27, 3
      %p290 = por %p288, %p289
      %p291 = scmp.ne.s32.totalorder %s283, %s286
      %p292 = scmp.eq.s32.totalorder %s27, 0
      %p293 = por %p291, %p292
      %p294 = scmp.ne.s32.totalorder %s283, %s286
      %p295 = scmp.eq.s32.totalorder %s32, 3
      %p296 = por %p294, %p295
      %p297 = scmp.ne.s32.totalorder %s286, %s287
      %p298 = scmp.eq.s32.totalorder %s32, 0
      %p299 = por %p297, %p298
      %p300 = scmp.ne.s32.totalorder %s286, %s287
      %p301 = scmp.eq.s32.totalorder %s33, 3
      %p302 = por %p300, %p301
      %p304 = scmp.ne.s32.totalorder %s287, %s303
      %p305 = scmp.eq.s32.totalorder %s33, 0
      %p306 = por %p304, %p305
      %s307 = ssub.s32 %s35, %s42
      %p308 = scmp.eq.s32.totalorder %s307, 0
      %s310 = sadd.s32 %s309, 1
      %s311 = scalar_select %p308, %s309, %s310
      %p314 = pneg %p308
      %p315 = scmp.eq.s32.totalorder %s27, 3
      %p316 = por %p314, %p315
      %p317 = scmp.ne.s32.totalorder %s309, %s312
      %p318 = scmp.eq.s32.totalorder %s27, 0
      %p319 = por %p317, %p318
      %p320 = scmp.ne.s32.totalorder %s309, %s312
      %p321 = scmp.eq.s32.totalorder %s32, 3
      %p322 = por %p320, %p321
      %p323 = scmp.ne.s32.totalorder %s312, %s313
      %p324 = scmp.eq.s32.totalorder %s32, 0
      %p325 = por %p323, %p324
      %p326 = scmp.ne.s32.totalorder %s312, %s313
      %p327 = scmp.eq.s32.totalorder %s33, 3
      %p328 = por %p326, %p327
      %p330 = scmp.ne.s32.totalorder %s313, %s329
      %p331 = scmp.eq.s32.totalorder %s33, 0
      %p332 = por %p330, %p331
      %s333 = ssub.s32 %s35, %s42
      %p334 = scmp.eq.s32.totalorder %s333, 0
      %s336 = sadd.s32 %s335, 1
      %s337 = scalar_select %p334, %s335, %s336
      %p340 = pneg %p334
      %p341 = scmp.eq.s32.totalorder %s27, 3
      %p342 = por %p340, %p341
      %p343 = scmp.ne.s32.totalorder %s335, %s338
      %p344 = scmp.eq.s32.totalorder %s27, 0
      %p345 = por %p343, %p344
      %p346 = scmp.ne.s32.totalorder %s335, %s338
      %p347 = scmp.eq.s32.totalorder %s32, 3
      %p348 = por %p346, %p347
      %p349 = scmp.ne.s32.totalorder %s338, %s339
      %p350 = scmp.eq.s32.totalorder %s32, 0
      %p351 = por %p349, %p350
      %p352 = scmp.ne.s32.totalorder %s338, %s339
      %p353 = scmp.eq.s32.totalorder %s33, 3
      %p354 = por %p352, %p353
      %p356 = scmp.ne.s32.totalorder %s339, %s355
      %p357 = scmp.eq.s32.totalorder %s33, 0
      %p358 = por %p356, %p357
      %s359 = ssub.s32 %s35, %s42
      %p360 = scmp.eq.s32.totalorder %s359, 0
      %s362 = sadd.s32 %s361, 1
      %s363 = scalar_select %p360, %s361, %s362
      %p366 = pneg %p360
      %p367 = scmp.eq.s32.totalorder %s27, 3
      %p368 = por %p366, %p367
      %p369 = scmp.ne.s32.totalorder %s361, %s364
      %p370 = scmp.eq.s32.totalorder %s27, 0
      %p371 = por %p369, %p370
      %p372 = scmp.ne.s32.totalorder %s361, %s364
      %p373 = scmp.eq.s32.totalorder %s32, 3
      %p374 = por %p372, %p373
      %p375 = scmp.ne.s32.totalorder %s364, %s365
      %p376 = scmp.eq.s32.totalorder %s32, 0
      %p377 = por %p375, %p376
      %p378 = scmp.ne.s32.totalorder %s364, %s365
      %p379 = scmp.eq.s32.totalorder %s33, 3
      %p380 = por %p378, %p379
      %p382 = scmp.ne.s32.totalorder %s365, %s381
      %p383 = scmp.eq.s32.totalorder %s33, 0
      %p384 = por %p382, %p383
      %s385 = ssub.s32 %s35, %s42
      %p386 = scmp.eq.s32.totalorder %s385, 0
      %s388 = sadd.s32 %s387, 1
      %s389 = scalar_select %p386, %s387, %s388
      %p392 = pneg %p386
      %p393 = scmp.eq.s32.totalorder %s27, 3
      %p394 = por %p392, %p393
      %p395 = scmp.ne.s32.totalorder %s387, %s390
      %p396 = scmp.eq.s32.totalorder %s27, 0
      %p397 = por %p395, %p396
      %p398 = scmp.ne.s32.totalorder %s387, %s390
      %p399 = scmp.eq.s32.totalorder %s32, 3
      %p400 = por %p398, %p399
      %p401 = scmp.ne.s32.totalorder %s390, %s391
      %p402 = scmp.eq.s32.totalorder %s32, 0
      %p403 = por %p401, %p402
      %p404 = scmp.ne.s32.totalorder %s390, %s391
      %p405 = scmp.eq.s32.totalorder %s33, 3
      %p406 = por %p404, %p405
      %p408 = scmp.ne.s32.totalorder %s391, %s407
      %p409 = scmp.eq.s32.totalorder %s33, 0
      %p410 = por %p408, %p409
      %s411 = ssub.s32 %s35, %s42
      %p412 = scmp.eq.s32.totalorder %s411, 0
      %s414 = sadd.s32 %s413, 1
      %s415 = scalar_select %p412, %s413, %s414
      %p418 = pneg %p412
      %p419 = scmp.eq.s32.totalorder %s27, 3
      %p420 = por %p418, %p419
      %p421 = scmp.ne.s32.totalorder %s413, %s416
      %p422 = scmp.eq.s32.totalorder %s27, 0
      %p423 = por %p421, %p422
      %p424 = scmp.ne.s32.totalorder %s413, %s416
      %p425 = scmp.eq.s32.totalorder %s32, 3
      %p426 = por %p424, %p425
      %p427 = scmp.ne.s32.totalorder %s416, %s417
      %p428 = scmp.eq.s32.totalorder %s32, 0
      %p429 = por %p427, %p428
      %p430 = scmp.ne.s32.totalorder %s416, %s417
      %p431 = scmp.eq.s32.totalorder %s33, 3
      %p432 = por %p430, %p431
      %p434 = scmp.ne.s32.totalorder %s417, %s433
      %p435 = scmp.eq.s32.totalorder %s33, 0
      %p436 = por %p434, %p435
      %s437 = ssub.s32 %s35, %s42
      %p438 = scmp.eq.s32.totalorder %s437, 0
      %s440 = sadd.s32 %s439, 1
      %s441 = scalar_select %p438, %s439, %s440
      %p444 = pneg %p438
      %p445 = scmp.eq.s32.totalorder %s27, 3
      %p446 = por %p444, %p445
      %p447 = scmp.ne.s32.totalorder %s439, %s442
      %p448 = scmp.eq.s32.totalorder %s27, 0
      %p449 = por %p447, %p448
      %p450 = scmp.ne.s32.totalorder %s439, %s442
      %p451 = scmp.eq.s32.totalorder %s32, 3
      %p452 = por %p450, %p451
      %p453 = scmp.ne.s32.totalorder %s442, %s443
      %p454 = scmp.eq.s32.totalorder %s32, 0
      %p455 = por %p453, %p454
      %p456 = scmp.ne.s32.totalorder %s442, %s443
      %p457 = scmp.eq.s32.totalorder %s33, 3
      %p458 = por %p456, %p457
      %p460 = scmp.ne.s32.totalorder %s443, %s459
      %p461 = scmp.eq.s32.totalorder %s33, 0
      %p462 = por %p460, %p461
      %s463 = ssub.s32 %s35, %s42
      %p464 = scmp.eq.s32.totalorder %s463, 0
      %s466 = sadd.s32 %s465, 1
      %s467 = scalar_select %p464, %s465, %s466
      %p470 = pneg %p464
      %p471 = scmp.eq.s32.totalorder %s27, 3
      %p472 = por %p470, %p471
      %p473 = scmp.ne.s32.totalorder %s465, %s468
      %p474 = scmp.eq.s32.totalorder %s27, 0
      %p475 = por %p473, %p474
      %p476 = scmp.ne.s32.totalorder %s465, %s468
      %p477 = scmp.eq.s32.totalorder %s32, 3
      %p478 = por %p476, %p477
      %p479 = scmp.ne.s32.totalorder %s468, %s469
      %p480 = scmp.eq.s32.totalorder %s32, 0
      %p481 = por %p479, %p480
      %p482 = scmp.ne.s32.totalorder %s468, %s469
      %p483 = scmp.eq.s32.totalorder %s33, 3
      %p484 = por %p482, %p483
      %p486 = scmp.ne.s32.totalorder %s469, %s485
      %p487 = scmp.eq.s32.totalorder %s33, 0
      %p488 = por %p486, %p487
      %s489 = ssub.s32 %s35, %s42
      %p490 = scmp.eq.s32.totalorder %s489, 0
      %s492 = sadd.s32 %s491, 1
      %s493 = scalar_select %p490, %s491, %s492
      %p496 = pneg %p490
      %p497 = scmp.eq.s32.totalorder %s27, 3
      %p498 = por %p496, %p497
      %p499 = scmp.ne.s32.totalorder %s491, %s494
      %p500 = scmp.eq.s32.totalorder %s27, 0
      %p501 = por %p499, %p500
      %p502 = scmp.ne.s32.totalorder %s491, %s494
      %p503 = scmp.eq.s32.totalorder %s32, 3
      %p504 = por %p502, %p503
      %p505 = scmp.ne.s32.totalorder %s494, %s495
      %p506 = scmp.eq.s32.totalorder %s32, 0
      %p507 = por %p505, %p506
      %p508 = scmp.ne.s32.totalorder %s494, %s495
      %p509 = scmp.eq.s32.totalorder %s33, 3
      %p510 = por %p508, %p509
      %p512 = scmp.ne.s32.totalorder %s495, %s511
      %p513 = scmp.eq.s32.totalorder %s33, 0
      %p514 = por %p512, %p513
      %s515 = ssub.s32 %s34, %s46
      %p516 = scmp.eq.s32.totalorder %s515, 0
      %s518 = sadd.s32 %s517, 1
      %s519 = scalar_select %p516, %s517, %s518
      %p522 = pneg %p516
      %p523 = scmp.eq.s32.totalorder %s27, 3
      %p524 = por %p522, %p523
      %p525 = scmp.ne.s32.totalorder %s517, %s520
      %p526 = scmp.eq.s32.totalorder %s27, 0
      %p527 = por %p525, %p526
      %p528 = scmp.ne.s32.totalorder %s517, %s520
      %p529 = scmp.eq.s32.totalorder %s32, 3
      %p530 = por %p528, %p529
      %p531 = scmp.ne.s32.totalorder %s520, %s521
      %p532 = scmp.eq.s32.totalorder %s32, 0
      %p533 = por %p531, %p532
      %p534 = scmp.ne.s32.totalorder %s520, %s521
      %p535 = scmp.eq.s32.totalorder %s33, 3
      %p536 = por %p534, %p535
      %p538 = scmp.ne.s32.totalorder %s521, %s537
      %p539 = scmp.eq.s32.totalorder %s33, 0
      %p540 = por %p538, %p539
      %p541 = scmp.le.s32.totalorder 1, %s27
      %p542 = scmp.lt.s32.totalorder %s27, 5
      %p543 = pnand %p541, %p542
      %p544 = pneg %p543
      // Predicated region
      $region9: #{tpu_custom_call.1} parent=5 // pred_check
        _
      $region10: #{tpu_custom_call.1} parent=5 // pred_check_branch
        %546 = sbr.rel (%p543) target = $region12
      $region11: #{tpu_custom_call.1} parent=5 // pred_region
        %s547 = ssub.s32 %s27, 1
      $region12: #{tpu_custom_call.1} parent=5 // pred_fallthru
        _
      %p548 = scmp.lt.s32.totalorder %s27, 4
      // Predicated region
      $region13: #{tpu_custom_call.1} parent=5 // pred_check
        %p549 = pneg %p548
      $region14: #{tpu_custom_call.1} parent=5 // pred_check_branch
        %551 = sbr.rel (%p549) target = $region16
      $region15: #{tpu_custom_call.1} parent=5 // pred_region
        // Predicated region
        $region17: #{tpu_custom_call.1} parent=15 // pred_check
          %p552 = pneg %p59
        $region18: #{tpu_custom_call.1} parent=15 // pred_check_branch
          %554 = sbr.rel (%p552) target = $region20
        $region19: #{tpu_custom_call.1} parent=15 // pred_region
          %p555 = scmp.lt.s32.totalorder %s34, 1
          %s556 = scalar_select %p555, %s34, 1
          %s557 = smul.addr %s556, 8
          %s558 = scalar_lea.vmem %s0, %s557
        $region20: #{tpu_custom_call.1} parent=15 // pred_fallthru
          _
        // Predicated region
        $region21: #{tpu_custom_call.1} parent=15 // pred_check
          %p559 = pneg %p85
        $region22: #{tpu_custom_call.1} parent=15 // pred_check_branch
          %561 = sbr.rel (%p559) target = $region24
        $region23: #{tpu_custom_call.1} parent=15 // pred_region
          %p562 = scmp.lt.s32.totalorder %s34, 1
          %s563 = scalar_select %p562, %s34, 1
          %s564 = scalar_lea.vmem %s1, %s563
        $region24: #{tpu_custom_call.1} parent=15 // pred_fallthru
          _
        // Predicated region
        $region25: #{tpu_custom_call.1} parent=15 // pred_check
          %p565 = pneg %p111
        $region26: #{tpu_custom_call.1} parent=15 // pred_check_branch
          %567 = sbr.rel (%p565) target = $region28
        $region27: #{tpu_custom_call.1} parent=15 // pred_region
          %p568 = scmp.lt.s32.totalorder %s35, 1
          %s569 = scalar_select %p568, %s35, 1
          %s570 = smul.addr %s569, 16
          %s571 = smul.addr %s570, 4
          %s572 = scalar_lea.vmem %s2, %s571
        $region28: #{tpu_custom_call.1} parent=15 // pred_fallthru
          _
        // Predicated region
        $region29: #{tpu_custom_call.1} parent=15 // pred_check
          %p573 = pneg %p137
        $region30: #{tpu_custom_call.1} parent=15 // pred_check_branch
          %575 = sbr.rel (%p573) target = $region32
        $region31: #{tpu_custom_call.1} parent=15 // pred_region
          %p576 = scmp.lt.s32.totalorder %s35, 1
          %s577 = scalar_select %p576, %s35, 1
          %s578 = smul.addr %s577, 4
          %s579 = scalar_lea.vmem %s3, %s578
        $region32: #{tpu_custom_call.1} parent=15 // pred_fallthru
          _
        // Predicated region
        $region33: #{tpu_custom_call.1} parent=15 // pred_check
          %p580 = pneg %p163
        $region34: #{tpu_custom_call.1} parent=15 // pred_check_branch
          %582 = sbr.rel (%p580) target = $region36
        $region35: #{tpu_custom_call.1} parent=15 // pred_region
          %p583 = scmp.lt.s32.totalorder %s35, 1
          %s584 = scalar_select %p583, %s35, 1
          %s585 = smul.addr %s584, 16
          %s586 = smul.addr %s585, 4
          %s587 = scalar_lea.vmem %s4, %s586
        $region36: #{tpu_custom_call.1} parent=15 // pred_fallthru
          _
        // Predicated region
        $region37: #{tpu_custom_call.1} parent=15 // pred_check
          %p588 = pneg %p189
        $region38: #{tpu_custom_call.1} parent=15 // pred_check_branch
          %590 = sbr.rel (%p588) target = $region40
        $region39: #{tpu_custom_call.1} parent=15 // pred_region
          %p591 = scmp.lt.s32.totalorder %s35, 1
          %s592 = scalar_select %p591, %s35, 1
          %s593 = smul.addr %s592, 4
          %s594 = scalar_lea.vmem %s5, %s593
        $region40: #{tpu_custom_call.1} parent=15 // pred_fallthru
          _
        // Predicated region
        $region41: #{tpu_custom_call.1} parent=15 // pred_check
          %p595 = pneg %p215
        $region42: #{tpu_custom_call.1} parent=15 // pred_check_branch
          %597 = sbr.rel (%p595) target = $region44
        $region43: #{tpu_custom_call.1} parent=15 // pred_region
          %p598 = scmp.lt.s32.totalorder %s35, 1
          %s599 = scalar_select %p598, %s35, 1
          %s600 = smul.addr %s599, 16
          %s601 = smul.addr %s600, 4
          %s602 = scalar_lea.vmem %s6, %s601
        $region44: #{tpu_custom_call.1} parent=15 // pred_fallthru
          _
        // Predicated region
        $region45: #{tpu_custom_call.1} parent=15 // pred_check
          %p603 = pneg %p241
        $region46: #{tpu_custom_call.1} parent=15 // pred_check_branch
          %605 = sbr.rel (%p603) target = $region48
        $region47: #{tpu_custom_call.1} parent=15 // pred_region
          %p606 = scmp.lt.s32.totalorder %s35, 1
          %s607 = scalar_select %p606, %s35, 1
          %s608 = smul.addr %s607, 4
          %s609 = scalar_lea.vmem %s7, %s608
        $region48: #{tpu_custom_call.1} parent=15 // pred_fallthru
          _
        // Predicated region
        $region49: #{tpu_custom_call.1} parent=15 // pred_check
          %p610 = pneg %p267
        $region50: #{tpu_custom_call.1} parent=15 // pred_check_branch
          %612 = sbr.rel (%p610) target = $region52
        $region51: #{tpu_custom_call.1} parent=15 // pred_region
          %p613 = scmp.lt.s32.totalorder %s35, 1
          %s614 = scalar_select %p613, %s35, 1
          %s615 = smul.addr %s614, 4
          %s616 = smul.addr %s615, 4
          %s617 = scalar_lea.vmem %s8, %s616
        $region52: #{tpu_custom_call.1} parent=15 // pred_fallthru
          _
        // Predicated region
        $region53: #{tpu_custom_call.1} parent=15 // pred_check
          %p618 = pneg %p293
        $region54: #{tpu_custom_call.1} parent=15 // pred_check_branch
          %620 = sbr.rel (%p618) target = $region56
        $region55: #{tpu_custom_call.1} parent=15 // pred_region
          %p621 = scmp.lt.s32.totalorder %s35, 1
          %s622 = scalar_select %p621, %s35, 1
          %s623 = scalar_lea.vmem %s9, %s622
        $region56: #{tpu_custom_call.1} parent=15 // pred_fallthru
          _
        // Predicated region
        $region57: #{tpu_custom_call.1} parent=15 // pred_check
          %p624 = pneg %p319
        $region58: #{tpu_custom_call.1} parent=15 // pred_check_branch
          %626 = sbr.rel (%p624) target = $region60
        $region59: #{tpu_custom_call.1} parent=15 // pred_region
          %p627 = scmp.lt.s32.totalorder %s35, 1
          %s628 = scalar_select %p627, %s35, 1
          %s629 = scalar_lea.vmem %s10, %s628
        $region60: #{tpu_custom_call.1} parent=15 // pred_fallthru
          _
        // Predicated region
        $region61: #{tpu_custom_call.1} parent=15 // pred_check
          %p630 = pneg %p345
        $region62: #{tpu_custom_call.1} parent=15 // pred_check_branch
          %632 = sbr.rel (%p630) target = $region64
        $region63: #{tpu_custom_call.1} parent=15 // pred_region
          %p633 = scmp.lt.s32.totalorder %s35, 1
          %s634 = scalar_select %p633, %s35, 1
          %s635 = scalar_lea.vmem %s11, %s634
        $region64: #{tpu_custom_call.1} parent=15 // pred_fallthru
          _
        // Predicated region
        $region65: #{tpu_custom_call.1} parent=15 // pred_check
          %p636 = pneg %p371
        $region66: #{tpu_custom_call.1} parent=15 // pred_check_branch
          %638 = sbr.rel (%p636) target = $region68
        $region67: #{tpu_custom_call.1} parent=15 // pred_region
          %p639 = scmp.lt.s32.totalorder %s35, 1
          %s640 = scalar_select %p639, %s35, 1
          %s641 = smul.addr %s640, 4
          %s642 = smul.addr %s641, 4
          %s643 = scalar_lea.vmem %s12, %s642
        $region68: #{tpu_custom_call.1} parent=15 // pred_fallthru
          _
        // Predicated region
        $region69: #{tpu_custom_call.1} parent=15 // pred_check
          %p644 = pneg %p397
        $region70: #{tpu_custom_call.1} parent=15 // pred_check_branch
          %646 = sbr.rel (%p644) target = $region72
        $region71: #{tpu_custom_call.1} parent=15 // pred_region
          %p647 = scmp.lt.s32.totalorder %s35, 1
          %s648 = scalar_select %p647, %s35, 1
          %s649 = scalar_lea.vmem %s13, %s648
        $region72: #{tpu_custom_call.1} parent=15 // pred_fallthru
          _
        // Predicated region
        $region73: #{tpu_custom_call.1} parent=15 // pred_check
          %p650 = pneg %p423
        $region74: #{tpu_custom_call.1} parent=15 // pred_check_branch
          %652 = sbr.rel (%p650) target = $region76
        $region75: #{tpu_custom_call.1} parent=15 // pred_region
          %p653 = scmp.lt.s32.totalorder %s35, 1
          %s654 = scalar_select %p653, %s35, 1
          %s655 = smul.addr %s654, 8
          %s656 = smul.addr %s655, 4
          %s657 = scalar_lea.vmem %s14, %s656
        $region76: #{tpu_custom_call.1} parent=15 // pred_fallthru
          _
        // Predicated region
        $region77: #{tpu_custom_call.1} parent=15 // pred_check
          %p658 = pneg %p449
        $region78: #{tpu_custom_call.1} parent=15 // pred_check_branch
          %660 = sbr.rel (%p658) target = $region80
        $region79: #{tpu_custom_call.1} parent=15 // pred_region
          %p661 = scmp.lt.s32.totalorder %s35, 1
          %s662 = scalar_select %p661, %s35, 1
          %s663 = scalar_lea.vmem %s15, %s662
        $region80: #{tpu_custom_call.1} parent=15 // pred_fallthru
          _
        // Predicated region
        $region81: #{tpu_custom_call.1} parent=15 // pred_check
          %p664 = pneg %p475
        $region82: #{tpu_custom_call.1} parent=15 // pred_check_branch
          %666 = sbr.rel (%p664) target = $region84
        $region83: #{tpu_custom_call.1} parent=15 // pred_region
          %p667 = scmp.lt.s32.totalorder %s35, 1
          %s668 = scalar_select %p667, %s35, 1
          %s669 = scalar_lea.vmem %s16, %s668
        $region84: #{tpu_custom_call.1} parent=15 // pred_fallthru
          _
        // Predicated region
        $region85: #{tpu_custom_call.1} parent=15 // pred_check
          %p670 = pneg %p501
        $region86: #{tpu_custom_call.1} parent=15 // pred_check_branch
          %672 = sbr.rel (%p670) target = $region88
        $region87: #{tpu_custom_call.1} parent=15 // pred_region
          %p673 = scmp.lt.s32.totalorder %s35, 1
          %s674 = scalar_select %p673, %s35, 1
          %s675 = scalar_lea.vmem %s17, %s674
        $region88: #{tpu_custom_call.1} parent=15 // pred_fallthru
          _
      $region16: #{tpu_custom_call.1} parent=5 // pred_fallthru
        _
      %p676 = scmp.le.s32.totalorder 1, %s27
      %p677 = scmp.lt.s32.totalorder %s27, 5
      %p678 = pnand %p676, %p677
      %p679 = pneg %p678
      // Predicated region
      $region89: #{tpu_custom_call.1} parent=5 // pred_check
        _
      $region90: #{tpu_custom_call.1} parent=5 // pred_check_branch
        %681 = sbr.rel (%p678) target = $region92
      $region91: #{tpu_custom_call.1} parent=5 // pred_region
        %s682 = ssub.s32 %s27, 1
        %p683 = scmp.lt.s32.totalorder %s36, 1
        %s684 = scalar_select %p683, %s36, 1
        %s685 = smul.addr %s684, 8
        %s686 = scalar_lea.vmem %s0, %s685
        %p687 = pneg %p65
        %p688 = pneg %p62
        %p689 = scmp.lt.s32.totalorder %s36, 1
        %s690 = scalar_select %p689, %s36, 1
        %s691 = scalar_lea.vmem %s1, %s690
        %p692 = pneg %p91
        %p693 = pneg %p88
        %p694 = scmp.lt.s32.totalorder %s37, 1
        %s695 = scalar_select %p694, %s37, 1
        %s696 = smul.addr %s695, 16
        %s697 = smul.addr %s696, 4
        %s698 = scalar_lea.vmem %s2, %s697
        %p699 = pneg %p117
        %p700 = pneg %p114
        %p701 = scmp.lt.s32.totalorder %s37, 1
        %s702 = scalar_select %p701, %s37, 1
        %s703 = smul.addr %s702, 4
        %s704 = scalar_lea.vmem %s3, %s703
        %p705 = pneg %p143
        %p706 = pneg %p140
        %p707 = scmp.lt.s32.totalorder %s37, 1
        %s708 = scalar_select %p707, %s37, 1
        %s709 = smul.addr %s708, 16
        %s710 = smul.addr %s709, 4
        %s711 = scalar_lea.vmem %s4, %s710
        %p712 = pneg %p169
        %p713 = pneg %p166
        %p714 = scmp.lt.s32.totalorder %s37, 1
        %s715 = scalar_select %p714, %s37, 1
        %s716 = smul.addr %s715, 4
        %s717 = scalar_lea.vmem %s5, %s716
        %p718 = pneg %p195
        %p719 = pneg %p192
        %p720 = scmp.lt.s32.totalorder %s37, 1
        %s721 = scalar_select %p720, %s37, 1
        %s722 = smul.addr %s721, 16
        %s723 = smul.addr %s722, 4
        %s724 = scalar_lea.vmem %s6, %s723
        %p725 = pneg %p221
        %p726 = pneg %p218
        %p727 = scmp.lt.s32.totalorder %s37, 1
        %s728 = scalar_select %p727, %s37, 1
        %s729 = smul.addr %s728, 4
        %s730 = scalar_lea.vmem %s7, %s729
        %p731 = pneg %p247
        %p732 = pneg %p244
        %p733 = scmp.lt.s32.totalorder %s37, 1
        %s734 = scalar_select %p733, %s37, 1
        %s735 = smul.addr %s734, 4
        %s736 = smul.addr %s735, 4
        %s737 = scalar_lea.vmem %s8, %s736
        %p738 = pneg %p273
        %p739 = pneg %p270
        %p740 = scmp.lt.s32.totalorder %s37, 1
        %s741 = scalar_select %p740, %s37, 1
        %s742 = scalar_lea.vmem %s9, %s741
        %p743 = pneg %p299
        %p744 = pneg %p296
        %p745 = scmp.lt.s32.totalorder %s37, 1
        %s746 = scalar_select %p745, %s37, 1
        %s747 = scalar_lea.vmem %s10, %s746
        %p748 = pneg %p325
        %p749 = pneg %p322
        %p750 = scmp.lt.s32.totalorder %s37, 1
        %s751 = scalar_select %p750, %s37, 1
        %s752 = scalar_lea.vmem %s11, %s751
        %p753 = pneg %p351
        %p754 = pneg %p348
        %p755 = scmp.lt.s32.totalorder %s37, 1
        %s756 = scalar_select %p755, %s37, 1
        %s757 = smul.addr %s756, 4
        %s758 = smul.addr %s757, 4
        %s759 = scalar_lea.vmem %s12, %s758
        %p760 = pneg %p377
        %p761 = pneg %p374
        %p762 = scmp.lt.s32.totalorder %s37, 1
        %s763 = scalar_select %p762, %s37, 1
        %s764 = scalar_lea.vmem %s13, %s763
        %p765 = pneg %p403
        %p766 = pneg %p400
        %p767 = scmp.lt.s32.totalorder %s37, 1
        %s768 = scalar_select %p767, %s37, 1
        %s769 = smul.addr %s768, 8
        %s770 = smul.addr %s769, 4
        %s771 = scalar_lea.vmem %s14, %s770
        %p772 = pneg %p429
        %p773 = pneg %p426
        %p774 = scmp.lt.s32.totalorder %s37, 1
        %s775 = scalar_select %p774, %s37, 1
        %s776 = scalar_lea.vmem %s15, %s775
        %p777 = pneg %p455
        %p778 = pneg %p452
        %p779 = scmp.lt.s32.totalorder %s37, 1
        %s780 = scalar_select %p779, %s37, 1
        %s781 = scalar_lea.vmem %s16, %s780
        %p782 = pneg %p481
        %p783 = pneg %p478
        %p784 = scmp.lt.s32.totalorder %s37, 1
        %s785 = scalar_select %p784, %s37, 1
        %s786 = scalar_lea.vmem %s17, %s785
        %p787 = pneg %p507
        %p788 = pneg %p504
        %p789 = pneg %p533
        %p790 = pneg %p530
        %s791 = sand.u32 %s520, 1
        %s792 = scalar_lea.sflag [#allocation4], %s791
        %s793 = sand.u32 %s520, 1
        %s794 = smul.addr %s793, 8
        %s795 = scalar_lea.vmem [#allocation3], %s794
        %p796 = scmp.lt.s32.totalorder %s36, 1
        %s797 = scalar_select %p796, %s36, 1
        %s798 = smul.addr %s797, 8
        %s799 = scalar_lea.vmem %s0, %s798
        %p800 = scmp.lt.s32.totalorder %s36, 1
        %s801 = scalar_select %p800, %s36, 1
        %s802 = scalar_lea.vmem %s1, %s801
        %p803 = scmp.lt.s32.totalorder %s37, 1
        %s804 = scalar_select %p803, %s37, 1
        %s805 = smul.addr %s804, 16
        %s806 = smul.addr %s805, 4
        %s807 = scalar_lea.vmem %s2, %s806
        %p808 = scmp.lt.s32.totalorder %s37, 1
        %s809 = scalar_select %p808, %s37, 1
        %s810 = smul.addr %s809, 4
        %s811 = scalar_lea.vmem %s3, %s810
        %p812 = scmp.lt.s32.totalorder %s37, 1
        %s813 = scalar_select %p812, %s37, 1
        %s814 = smul.addr %s813, 16
        %s815 = smul.addr %s814, 4
        %s816 = scalar_lea.vmem %s4, %s815
        %p817 = scmp.lt.s32.totalorder %s37, 1
        %s818 = scalar_select %p817, %s37, 1
        %s819 = smul.addr %s818, 4
        %s820 = scalar_lea.vmem %s5, %s819
        %p821 = scmp.lt.s32.totalorder %s37, 1
        %s822 = scalar_select %p821, %s37, 1
        %s823 = smul.addr %s822, 16
        %s824 = smul.addr %s823, 4
        %s825 = scalar_lea.vmem %s6, %s824
        %p826 = scmp.lt.s32.totalorder %s37, 1
        %s827 = scalar_select %p826, %s37, 1
        %s828 = smul.addr %s827, 4
        %s829 = scalar_lea.vmem %s7, %s828
        %p830 = scmp.lt.s32.totalorder %s37, 1
        %s831 = scalar_select %p830, %s37, 1
        %s832 = smul.addr %s831, 4
        %s833 = smul.addr %s832, 4
        %s834 = scalar_lea.vmem %s8, %s833
        %p835 = scmp.lt.s32.totalorder %s37, 1
        %s836 = scalar_select %p835, %s37, 1
        %s837 = scalar_lea.vmem %s9, %s836
        %p838 = scmp.lt.s32.totalorder %s37, 1
        %s839 = scalar_select %p838, %s37, 1
        %s840 = scalar_lea.vmem %s10, %s839
        %p841 = scmp.lt.s32.totalorder %s37, 1
        %s842 = scalar_select %p841, %s37, 1
        %s843 = scalar_lea.vmem %s11, %s842
        %p844 = scmp.lt.s32.totalorder %s37, 1
        %s845 = scalar_select %p844, %s37, 1
        %s846 = smul.addr %s845, 4
        %s847 = smul.addr %s846, 4
        %s848 = scalar_lea.vmem %s12, %s847
        %p849 = scmp.lt.s32.totalorder %s37, 1
        %s850 = scalar_select %p849, %s37, 1
        %s851 = scalar_lea.vmem %s13, %s850
        %p852 = scmp.lt.s32.totalorder %s37, 1
        %s853 = scalar_select %p852, %s37, 1
        %s854 = smul.addr %s853, 8
        %s855 = smul.addr %s854, 4
        %s856 = scalar_lea.vmem %s14, %s855
        %p857 = scmp.lt.s32.totalorder %s37, 1
        %s858 = scalar_select %p857, %s37, 1
        %s859 = scalar_lea.vmem %s15, %s858
        %p860 = scmp.lt.s32.totalorder %s37, 1
        %s861 = scalar_select %p860, %s37, 1
        %s862 = scalar_lea.vmem %s16, %s861
        %p863 = scmp.lt.s32.totalorder %s37, 1
        %s864 = scalar_select %p863, %s37, 1
        %s865 = scalar_lea.vmem %s17, %s864
        %p867 = scmp.eq.s32.totalorder %s37, 0
        // Predicated region
        $region93: #{tpu_custom_call.1} parent=91 // pred_check
          %p868 = pneg %p867
        $region94: #{tpu_custom_call.1} parent=91 // pred_check_branch
          %870 = sbr.rel (%p868) target = $region96
        $region95: #{tpu_custom_call.1} parent=91 // pred_region
          %v871 = vld [vmem:[%s799] sm:$0xff]
          %vm872 = vcmask 261120
          %873 = vst.msk [vmem:[#allocation2] sm:$0xff] %vm872, %v871
        $region96: #{tpu_custom_call.1} parent=91 // pred_fallthru
          _
        %v874 = vld [vmem:[#allocation2] sm:$0xff]
        %v875 = vld [vmem:[%s802] sm:$0x1]
        %v876 = vsub.f32 %v875, 1.0
        %v877 = vmul.f32 %v876, 1e+09
        %v878 = vpack.c.bf16 %v874, %v874
        %v879 = vld [vmem:[%s807] sm:$0xf]
        %v880 = vld [vmem:[%s807 + $0x4] sm:$0xf]
        %v881 = vld [vmem:[%s807 + $0x8] sm:$0xf]
        %v882 = vld [vmem:[%s807 + $0xc] sm:$0xf]
        %v883 = vld [vmem:[%s807 + $0x10] sm:$0xf]
        %v884 = vld [vmem:[%s807 + $0x14] sm:$0xf]
        %v885 = vld [vmem:[%s807 + $0x18] sm:$0xf]
        %v886 = vld [vmem:[%s807 + $0x1c] sm:$0xf]
        %v887 = vld [vmem:[%s807 + $0x20] sm:$0xf]
        %v888 = vld [vmem:[%s807 + $0x24] sm:$0xf]
        %v889 = vld [vmem:[%s807 + $0x28] sm:$0xf]
        %v890 = vld [vmem:[%s807 + $0x2c] sm:$0xf]
        %v891 = vld [vmem:[%s807 + $0x30] sm:$0xf]
        %v892 = vld [vmem:[%s807 + $0x34] sm:$0xf]
        %v893 = vld [vmem:[%s807 + $0x38] sm:$0xf]
        %v894 = vld [vmem:[%s807 + $0x3c] sm:$0xf]
        %v895 = vld [vmem:[%s811] sm:$0x1]
        %v896 = vld [vmem:[%s811 + $0x1] sm:$0x1]
        %v897 = vld [vmem:[%s811 + $0x2] sm:$0x1]
        %v898 = vld [vmem:[%s811 + $0x3] sm:$0x1]
        %v903 = vperm.slane %v895, 0
        %v904 = vperm.slane %v896, 0
        %v905 = vperm.slane %v897, 0
        %v906 = vperm.slane %v898, 0
        %v915 = vunpack.c.l.b16 %v879
        %v916 = vunpack.c.l.b16 %v880
        %v917 = vunpack.c.l.b16 %v881
        %v918 = vunpack.c.l.b16 %v882
        %v919 = vpack.c.b16 %v916, %v915
        %v920 = vpack.c.b16 %v918, %v917
        %vm923 = vcmask 261120
        %v925 = vsel %vm923, %v878, 0
        %927 = vmatpush.bf16.msra.mxu0 0
        %928 = vmatpush.bf16.msra.mxu0 0
        %929 = vmatpush.bf16.msra.mxu0 0
        %930 = vmatpush.bf16.msra.mxu0 0
        %931 = vmatpush.bf16.msra.mxu0 0
        %932 = vmatpush.bf16.msra.mxu0 0
        %933 = vmatpush.bf16.msra.mxu0 %v920
        %934 = vmatpush.bf16.msra.mxu0 %v919
        %935 = vmatmul.bf16.gmra.mxu0 %v925
        %v936 = vpop.f32.mrf.mxu0
        %v937 = vadd.f32 %v903, %v936
        %v938 = vpop.f32.mrf.mxu0
        %939 = vdwg.mxu0
        %v944 = vunpack.c.l.b16 %v883
        %v945 = vunpack.c.l.b16 %v884
        %v946 = vunpack.c.l.b16 %v885
        %v947 = vunpack.c.l.b16 %v886
        %v948 = vpack.c.b16 %v945, %v944
        %v949 = vpack.c.b16 %v947, %v946
        %952 = vmatpush.bf16.msra.mxu0 0
        %953 = vmatpush.bf16.msra.mxu0 0
        %954 = vmatpush.bf16.msra.mxu0 0
        %955 = vmatpush.bf16.msra.mxu0 0
        %956 = vmatpush.bf16.msra.mxu0 0
        %957 = vmatpush.bf16.msra.mxu0 0
        %958 = vmatpush.bf16.msra.mxu0 %v949
        %959 = vmatpush.bf16.msra.mxu0 %v948
        %960 = vmatmul.bf16.gmra.mxu0 %v925
        %v961 = vpop.f32.mrf.mxu0
        %v962 = vadd.f32 %v904, %v961
        %v963 = vpop.f32.mrf.mxu0
        %964 = vdwg.mxu0
        %v969 = vunpack.c.l.b16 %v887
        %v970 = vunpack.c.l.b16 %v888
        %v971 = vunpack.c.l.b16 %v889
        %v972 = vunpack.c.l.b16 %v890
        %v973 = vpack.c.b16 %v970, %v969
        %v974 = vpack.c.b16 %v972, %v971
        %977 = vmatpush.bf16.msra.mxu0 0
        %978 = vmatpush.bf16.msra.mxu0 0
        %979 = vmatpush.bf16.msra.mxu0 0
        %980 = vmatpush.bf16.msra.mxu0 0
        %981 = vmatpush.bf16.msra.mxu0 0
        %982 = vmatpush.bf16.msra.mxu0 0
        %983 = vmatpush.bf16.msra.mxu0 %v974
        %984 = vmatpush.bf16.msra.mxu0 %v973
        %985 = vmatmul.bf16.gmra.mxu0 %v925
        %v986 = vpop.f32.mrf.mxu0
        %v987 = vadd.f32 %v905, %v986
        %v988 = vpop.f32.mrf.mxu0
        %989 = vdwg.mxu0
        %v994 = vunpack.c.l.b16 %v891
        %v995 = vunpack.c.l.b16 %v892
        %v996 = vunpack.c.l.b16 %v893
        %v997 = vunpack.c.l.b16 %v894
        %v998 = vpack.c.b16 %v995, %v994
        %v999 = vpack.c.b16 %v997, %v996
        %1002 = vmatpush.bf16.msra.mxu0 0
        %1003 = vmatpush.bf16.msra.mxu0 0
        %1004 = vmatpush.bf16.msra.mxu0 0
        %1005 = vmatpush.bf16.msra.mxu0 0
        %1006 = vmatpush.bf16.msra.mxu0 0
        %1007 = vmatpush.bf16.msra.mxu0 0
        %1008 = vmatpush.bf16.msra.mxu0 %v999
        %1009 = vmatpush.bf16.msra.mxu0 %v998
        %1010 = vmatmul.bf16.gmra.mxu0 %v925
        %v1011 = vpop.f32.mrf.mxu0
        %v1012 = vadd.f32 %v906, %v1011
        %v1013 = vpop.f32.mrf.mxu0
        %1014 = vdwg.mxu0
        %v1015 = vld [vmem:[%s816] sm:$0xf]
        %v1016 = vld [vmem:[%s816 + $0x4] sm:$0xf]
        %v1017 = vld [vmem:[%s816 + $0x8] sm:$0xf]
        %v1018 = vld [vmem:[%s816 + $0xc] sm:$0xf]
        %v1019 = vld [vmem:[%s816 + $0x10] sm:$0xf]
        %v1020 = vld [vmem:[%s816 + $0x14] sm:$0xf]
        %v1021 = vld [vmem:[%s816 + $0x18] sm:$0xf]
        %v1022 = vld [vmem:[%s816 + $0x1c] sm:$0xf]
        %v1023 = vld [vmem:[%s816 + $0x20] sm:$0xf]
        %v1024 = vld [vmem:[%s816 + $0x24] sm:$0xf]
        %v1025 = vld [vmem:[%s816 + $0x28] sm:$0xf]
        %v1026 = vld [vmem:[%s816 + $0x2c] sm:$0xf]
        %v1027 = vld [vmem:[%s816 + $0x30] sm:$0xf]
        %v1028 = vld [vmem:[%s816 + $0x34] sm:$0xf]
        %v1029 = vld [vmem:[%s816 + $0x38] sm:$0xf]
        %v1030 = vld [vmem:[%s816 + $0x3c] sm:$0xf]
        %v1031 = vld [vmem:[%s820] sm:$0x1]
        %v1032 = vld [vmem:[%s820 + $0x1] sm:$0x1]
        %v1033 = vld [vmem:[%s820 + $0x2] sm:$0x1]
        %v1034 = vld [vmem:[%s820 + $0x3] sm:$0x1]
        %v1039 = vperm.slane %v1031, 0
        %v1040 = vperm.slane %v1032, 0
        %v1041 = vperm.slane %v1033, 0
        %v1042 = vperm.slane %v1034, 0
        %v1051 = vunpack.c.l.b16 %v1015
        %v1052 = vunpack.c.l.b16 %v1016
        %v1053 = vunpack.c.l.b16 %v1017
        %v1054 = vunpack.c.l.b16 %v1018
        %v1055 = vpack.c.b16 %v1052, %v1051
        %v1056 = vpack.c.b16 %v1054, %v1053
        %1059 = vmatpush.bf16.msra.mxu0 0
        %1060 = vmatpush.bf16.msra.mxu0 0
        %1061 = vmatpush.bf16.msra.mxu0 0
        %1062 = vmatpush.bf16.msra.mxu0 0
        %1063 = vmatpush.bf16.msra.mxu0 0
        %1064 = vmatpush.bf16.msra.mxu0 0
        %1065 = vmatpush.bf16.msra.mxu0 %v1056
        %1066 = vmatpush.bf16.msra.mxu0 %v1055
        %1067 = vmatmul.bf16.gmra.mxu0 %v925
        %v1068 = vpop.f32.mrf.mxu0
        %v1069 = vadd.f32 %v1039, %v1068
        %v1070 = vpop.f32.mrf.mxu0
        %1071 = vdwg.mxu0
        %v1076 = vunpack.c.l.b16 %v1019
        %v1077 = vunpack.c.l.b16 %v1020
        %v1078 = vunpack.c.l.b16 %v1021
        %v1079 = vunpack.c.l.b16 %v1022
        %v1080 = vpack.c.b16 %v1077, %v1076
        %v1081 = vpack.c.b16 %v1079, %v1078
        %1084 = vmatpush.bf16.msra.mxu0 0
        %1085 = vmatpush.bf16.msra.mxu0 0
        %1086 = vmatpush.bf16.msra.mxu0 0
        %1087 = vmatpush.bf16.msra.mxu0 0
        %1088 = vmatpush.bf16.msra.mxu0 0
        %1089 = vmatpush.bf16.msra.mxu0 0
        %1090 = vmatpush.bf16.msra.mxu0 %v1081
        %1091 = vmatpush.bf16.msra.mxu0 %v1080
        %1092 = vmatmul.bf16.gmra.mxu0 %v925
        %v1093 = vpop.f32.mrf.mxu0
        %v1094 = vadd.f32 %v1040, %v1093
        %v1095 = vpop.f32.mrf.mxu0
        %1096 = vdwg.mxu0
        %v1101 = vunpack.c.l.b16 %v1023
        %v1102 = vunpack.c.l.b16 %v1024
        %v1103 = vunpack.c.l.b16 %v1025
        %v1104 = vunpack.c.l.b16 %v1026
        %v1105 = vpack.c.b16 %v1102, %v1101
        %v1106 = vpack.c.b16 %v1104, %v1103
        %1109 = vmatpush.bf16.msra.mxu0 0
        %1110 = vmatpush.bf16.msra.mxu0 0
        %1111 = vmatpush.bf16.msra.mxu0 0
        %1112 = vmatpush.bf16.msra.mxu0 0
        %1113 = vmatpush.bf16.msra.mxu0 0
        %1114 = vmatpush.bf16.msra.mxu0 0
        %1115 = vmatpush.bf16.msra.mxu0 %v1106
        %1116 = vmatpush.bf16.msra.mxu0 %v1105
        %1117 = vmatmul.bf16.gmra.mxu0 %v925
        %v1118 = vpop.f32.mrf.mxu0
        %v1119 = vadd.f32 %v1041, %v1118
        %v1120 = vpop.f32.mrf.mxu0
        %1121 = vdwg.mxu0
        %v1126 = vunpack.c.l.b16 %v1027
        %v1127 = vunpack.c.l.b16 %v1028
        %v1128 = vunpack.c.l.b16 %v1029
        %v1129 = vunpack.c.l.b16 %v1030
        %v1130 = vpack.c.b16 %v1127, %v1126
        %v1131 = vpack.c.b16 %v1129, %v1128
        %1134 = vmatpush.bf16.msra.mxu0 0
        %1135 = vmatpush.bf16.msra.mxu0 0
        %1136 = vmatpush.bf16.msra.mxu0 0
        %1137 = vmatpush.bf16.msra.mxu0 0
        %1138 = vmatpush.bf16.msra.mxu0 0
        %1139 = vmatpush.bf16.msra.mxu0 0
        %1140 = vmatpush.bf16.msra.mxu0 %v1131
        %1141 = vmatpush.bf16.msra.mxu0 %v1130
        %1142 = vmatmul.bf16.gmra.mxu0 %v925
        %v1143 = vpop.f32.mrf.mxu0
        %v1144 = vadd.f32 %v1042, %v1143
        %v1145 = vpop.f32.mrf.mxu0
        %1146 = vdwg.mxu0
        %v1147 = vld [vmem:[%s825] sm:$0xf]
        %v1148 = vld [vmem:[%s825 + $0x4] sm:$0xf]
        %v1149 = vld [vmem:[%s825 + $0x8] sm:$0xf]
        %v1150 = vld [vmem:[%s825 + $0xc] sm:$0xf]
        %v1151 = vld [vmem:[%s825 + $0x10] sm:$0xf]
        %v1152 = vld [vmem:[%s825 + $0x14] sm:$0xf]
        %v1153 = vld [vmem:[%s825 + $0x18] sm:$0xf]
        %v1154 = vld [vmem:[%s825 + $0x1c] sm:$0xf]
        %v1155 = vld [vmem:[%s825 + $0x20] sm:$0xf]
        %v1156 = vld [vmem:[%s825 + $0x24] sm:$0xf]
        %v1157 = vld [vmem:[%s825 + $0x28] sm:$0xf]
        %v1158 = vld [vmem:[%s825 + $0x2c] sm:$0xf]
        %v1159 = vld [vmem:[%s825 + $0x30] sm:$0xf]
        %v1160 = vld [vmem:[%s825 + $0x34] sm:$0xf]
        %v1161 = vld [vmem:[%s825 + $0x38] sm:$0xf]
        %v1162 = vld [vmem:[%s825 + $0x3c] sm:$0xf]
        %v1163 = vld [vmem:[%s829] sm:$0x1]
        %v1164 = vld [vmem:[%s829 + $0x1] sm:$0x1]
        %v1165 = vld [vmem:[%s829 + $0x2] sm:$0x1]
        %v1166 = vld [vmem:[%s829 + $0x3] sm:$0x1]
        %v1171 = vperm.slane %v1163, 0
        %v1172 = vperm.slane %v1164, 0
        %v1173 = vperm.slane %v1165, 0
        %v1174 = vperm.slane %v1166, 0
        %v1183 = vunpack.c.l.b16 %v1147
        %v1184 = vunpack.c.l.b16 %v1148
        %v1185 = vunpack.c.l.b16 %v1149
        %v1186 = vunpack.c.l.b16 %v1150
        %v1187 = vpack.c.b16 %v1184, %v1183
        %v1188 = vpack.c.b16 %v1186, %v1185
        %1191 = vmatpush.bf16.msra.mxu0 0
        %1192 = vmatpush.bf16.msra.mxu0 0
        %1193 = vmatpush.bf16.msra.mxu0 0
        %1194 = vmatpush.bf16.msra.mxu0 0
        %1195 = vmatpush.bf16.msra.mxu0 0
        %1196 = vmatpush.bf16.msra.mxu0 0
        %1197 = vmatpush.bf16.msra.mxu0 %v1188
        %1198 = vmatpush.bf16.msra.mxu0 %v1187
        %1199 = vmatmul.bf16.gmra.mxu0 %v925
        %v1200 = vpop.f32.mrf.mxu0
        %v1201 = vadd.f32 %v1171, %v1200
        %v1202 = vpop.f32.mrf.mxu0
        %1203 = vdwg.mxu0
        %v1208 = vunpack.c.l.b16 %v1151
        %v1209 = vunpack.c.l.b16 %v1152
        %v1210 = vunpack.c.l.b16 %v1153
        %v1211 = vunpack.c.l.b16 %v1154
        %v1212 = vpack.c.b16 %v1209, %v1208
        %v1213 = vpack.c.b16 %v1211, %v1210
        %1216 = vmatpush.bf16.msra.mxu0 0
        %1217 = vmatpush.bf16.msra.mxu0 0
        %1218 = vmatpush.bf16.msra.mxu0 0
        %1219 = vmatpush.bf16.msra.mxu0 0
        %1220 = vmatpush.bf16.msra.mxu0 0
        %1221 = vmatpush.bf16.msra.mxu0 0
        %1222 = vmatpush.bf16.msra.mxu0 %v1213
        %1223 = vmatpush.bf16.msra.mxu0 %v1212
        %1224 = vmatmul.bf16.gmra.mxu0 %v925
        %v1225 = vpop.f32.mrf.mxu0
        %v1226 = vadd.f32 %v1172, %v1225
        %v1227 = vpop.f32.mrf.mxu0
        %1228 = vdwg.mxu0
        %v1233 = vunpack.c.l.b16 %v1155
        %v1234 = vunpack.c.l.b16 %v1156
        %v1235 = vunpack.c.l.b16 %v1157
        %v1236 = vunpack.c.l.b16 %v1158
        %v1237 = vpack.c.b16 %v1234, %v1233
        %v1238 = vpack.c.b16 %v1236, %v1235
        %1241 = vmatpush.bf16.msra.mxu0 0
        %1242 = vmatpush.bf16.msra.mxu0 0
        %1243 = vmatpush.bf16.msra.mxu0 0
        %1244 = vmatpush.bf16.msra.mxu0 0
        %1245 = vmatpush.bf16.msra.mxu0 0
        %1246 = vmatpush.bf16.msra.mxu0 0
        %1247 = vmatpush.bf16.msra.mxu0 %v1238
        %1248 = vmatpush.bf16.msra.mxu0 %v1237
        %1249 = vmatmul.bf16.gmra.mxu0 %v925
        %v1250 = vpop.f32.mrf.mxu0
        %v1251 = vadd.f32 %v1173, %v1250
        %v1252 = vpop.f32.mrf.mxu0
        %1253 = vdwg.mxu0
        %v1258 = vunpack.c.l.b16 %v1159
        %v1259 = vunpack.c.l.b16 %v1160
        %v1260 = vunpack.c.l.b16 %v1161
        %v1261 = vunpack.c.l.b16 %v1162
        %v1262 = vpack.c.b16 %v1259, %v1258
        %v1263 = vpack.c.b16 %v1261, %v1260
        %1266 = vmatpush.bf16.msra.mxu0 0
        %1267 = vmatpush.bf16.msra.mxu0 0
        %1268 = vmatpush.bf16.msra.mxu0 0
        %1269 = vmatpush.bf16.msra.mxu0 0
        %1270 = vmatpush.bf16.msra.mxu0 0
        %1271 = vmatpush.bf16.msra.mxu0 0
        %1272 = vmatpush.bf16.msra.mxu0 %v1263
        %1273 = vmatpush.bf16.msra.mxu0 %v1262
        %1274 = vmatmul.bf16.gmra.mxu0 %v925
        %v1275 = vpop.f32.mrf.mxu0
        %v1276 = vadd.f32 %v1174, %v1275
        %v1277 = vpop.f32.mrf.mxu0
        %1278 = vdwg.mxu0
        %v1279 = vpack.c.bf16 %v937, %v937
        %v1280 = vpack.c.bf16 %v962, %v962
        %v1281 = vpack.c.bf16 %v987, %v987
        %v1282 = vpack.c.bf16 %v1012, %v1012
        %v1283 = vpack.c.bf16 %v1069, %v1069
        %v1284 = vpack.c.bf16 %v1094, %v1094
        %v1285 = vpack.c.bf16 %v1119, %v1119
        %v1286 = vpack.c.bf16 %v1144, %v1144
        %v1288 = vperm.slane %v877, 0
        %vm1290 = vcmask 64512
        %v1292 = vsel %vm1290, %v1279, 0
        %v1295 = vsel %vm1290, %v1283, 0
        %1297 = vmatpush.bf16.xpose.msra.mxu0 0
        %1298 = vmatpush.bf16.xpose.msra.mxu0 0
        %1299 = vmatpush.bf16.xpose.msra.mxu0 0
        %1300 = vmatpush.bf16.xpose.msra.mxu0 0
        %1301 = vmatpush.bf16.xpose.msra.mxu0 0
        %1302 = vmatpush.bf16.xpose.msra.mxu0 0
        %1303 = vmatpush.bf16.xpose.msra.mxu0 0
        %1304 = vmatpush.bf16.xpose.msra.mxu0 %v1295
        %1305 = vmatmul.bf16.gmra.mxu0 %v1292
        %v1306 = vpop.f32.mrf.mxu0
        %v1307 = vadd.f32 %v1288, %v1306
        %v1308 = vpop.f32.mrf.mxu0
        %1309 = vdwg.mxu0
        %v1311 = vsel %vm1290, %v1280, 0
        %v1314 = vsel %vm1290, %v1284, 0
        %1316 = vmatpush.bf16.xpose.msra.mxu0 0
        %1317 = vmatpush.bf16.xpose.msra.mxu0 0
        %1318 = vmatpush.bf16.xpose.msra.mxu0 0
        %1319 = vmatpush.bf16.xpose.msra.mxu0 0
        %1320 = vmatpush.bf16.xpose.msra.mxu0 0
        %1321 = vmatpush.bf16.xpose.msra.mxu0 0
        %1322 = vmatpush.bf16.xpose.msra.mxu0 0
        %1323 = vmatpush.bf16.xpose.msra.mxu0 %v1314
        %1324 = vmatmul.bf16.gmra.mxu0 %v1311
        %v1325 = vpop.f32.mrf.mxu0
        %v1326 = vadd.f32 %v1288, %v1325
        %v1327 = vpop.f32.mrf.mxu0
        %1328 = vdwg.mxu0
        %v1330 = vsel %vm1290, %v1281, 0
        %v1333 = vsel %vm1290, %v1285, 0
        %1335 = vmatpush.bf16.xpose.msra.mxu0 0
        %1336 = vmatpush.bf16.xpose.msra.mxu0 0
        %1337 = vmatpush.bf16.xpose.msra.mxu0 0
        %1338 = vmatpush.bf16.xpose.msra.mxu0 0
        %1339 = vmatpush.bf16.xpose.msra.mxu0 0
        %1340 = vmatpush.bf16.xpose.msra.mxu0 0
        %1341 = vmatpush.bf16.xpose.msra.mxu0 0
        %1342 = vmatpush.bf16.xpose.msra.mxu0 %v1333
        %1343 = vmatmul.bf16.gmra.mxu0 %v1330
        %v1344 = vpop.f32.mrf.mxu0
        %v1345 = vadd.f32 %v1288, %v1344
        %v1346 = vpop.f32.mrf.mxu0
        %1347 = vdwg.mxu0
        %v1349 = vsel %vm1290, %v1282, 0
        %v1352 = vsel %vm1290, %v1286, 0
        %1354 = vmatpush.bf16.xpose.msra.mxu0 0
        %1355 = vmatpush.bf16.xpose.msra.mxu0 0
        %1356 = vmatpush.bf16.xpose.msra.mxu0 0
        %1357 = vmatpush.bf16.xpose.msra.mxu0 0
        %1358 = vmatpush.bf16.xpose.msra.mxu0 0
        %1359 = vmatpush.bf16.xpose.msra.mxu0 0
        %1360 = vmatpush.bf16.xpose.msra.mxu0 0
        %1361 = vmatpush.bf16.xpose.msra.mxu0 %v1352
        %1362 = vmatmul.bf16.gmra.mxu0 %v1349
        %v1363 = vpop.f32.mrf.mxu0
        %v1364 = vadd.f32 %v1288, %v1363
        %v1365 = vpop.f32.mrf.mxu0
        %1366 = vdwg.mxu0
        %v1367 = vsel %vm1290, %v1307, -inf
        %1368 = vmax.xlane.f32.xlu0 %v1367
        %v1369 = vpop.xlane.xlu0 %1368
        %v1370 = vsel %vm1290, %v1326, -inf
        %1371 = vmax.xlane.f32.xlu0 %v1370
        %v1372 = vpop.xlane.xlu0 %1371
        %v1373 = vsel %vm1290, %v1345, -inf
        %1374 = vmax.xlane.f32.xlu0 %v1373
        %v1375 = vpop.xlane.xlu0 %1374
        %v1376 = vsel %vm1290, %v1364, -inf
        %1377 = vmax.xlane.f32.xlu0 %v1376
        %v1378 = vpop.xlane.xlu0 %1377
        %v1379 = vsub.f32 %v1307, %v1369
        %v1380 = vsub.f32 %v1326, %v1372
        %v1381 = vsub.f32 %v1345, %v1375
        %v1382 = vsub.f32 %v1364, %v1378
        %v1383 = vmul.f32 %v1379, 1.442695
        %v1384 = vpow.pop %v1383
        %v1385 = vmul.f32 %v1380, 1.442695
        %v1386 = vpow.pop %v1385
        %v1387 = vmul.f32 %v1381, 1.442695
        %v1388 = vpow.pop %v1387
        %v1389 = vmul.f32 %v1382, 1.442695
        %v1390 = vpow.pop %v1389
        %v1391 = vsel %vm1290, %v1384, 0.0
        %1392 = vadd.xlane.f32.xlu0 %v1391
        %v1393 = vpop.xlane.xlu0 %1392
        %v1394 = vsel %vm1290, %v1386, 0.0
        %1395 = vadd.xlane.f32.xlu0 %v1394
        %v1396 = vpop.xlane.xlu0 %1395
        %v1397 = vsel %vm1290, %v1388, 0.0
        %1398 = vadd.xlane.f32.xlu0 %v1397
        %v1399 = vpop.xlane.xlu0 %1398
        %v1400 = vsel %vm1290, %v1390, 0.0
        %1401 = vadd.xlane.f32.xlu0 %v1400
        %v1402 = vpop.xlane.xlu0 %1401
        %v1403 = vrcp.pop %v1393
        %v1404 = vrcp.pop %v1396
        %v1405 = vrcp.pop %v1399
        %v1406 = vrcp.pop %v1402
        %v1407 = vmul.f32 %v1384, %v1403
        %v1408 = vmul.f32 %v1386, %v1404
        %v1409 = vmul.f32 %v1388, %v1405
        %v1410 = vmul.f32 %v1390, %v1406
        %v1411 = vpack.c.bf16 %v1407, %v1407
        %v1412 = vpack.c.bf16 %v1408, %v1408
        %v1413 = vpack.c.bf16 %v1409, %v1409
        %v1414 = vpack.c.bf16 %v1410, %v1410
        %v1415 = vpack.c.bf16 %v1201, %v1201
        %v1416 = vpack.c.bf16 %v1226, %v1226
        %v1417 = vpack.c.bf16 %v1251, %v1251
        %v1418 = vpack.c.bf16 %v1276, %v1276
        %v1420 = vsel %vm1290, %v1411, 0
        %vm1422 = vcmask 1043456
        %v1424 = vsel %vm1422, %v1415, 0
        %1426 = vmatpush.bf16.msra.mxu0 0
        %1427 = vmatpush.bf16.msra.mxu0 0
        %1428 = vmatpush.bf16.msra.mxu0 0
        %1429 = vmatpush.bf16.msra.mxu0 0
        %1430 = vmatpush.bf16.msra.mxu0 0
        %1431 = vmatpush.bf16.msra.mxu0 0
        %1432 = vmatpush.bf16.msra.mxu0 0
        %1433 = vmatpush.bf16.msra.mxu0 %v1424
        %1434 = vmatmul.bf16.gmra.mxu0 %v1420
        %v1435 = vpop.f32.mrf.mxu0
        %v1436 = vadd.f32 0.0, %v1435
        %v1437 = vpop.f32.mrf.mxu0
        %1438 = vdwg.mxu0
        %v1440 = vsel %vm1290, %v1412, 0
        %v1443 = vsel %vm1422, %v1416, 0
        %1445 = vmatpush.bf16.msra.mxu0 0
        %1446 = vmatpush.bf16.msra.mxu0 0
        %1447 = vmatpush.bf16.msra.mxu0 0
        %1448 = vmatpush.bf16.msra.mxu0 0
        %1449 = vmatpush.bf16.msra.mxu0 0
        %1450 = vmatpush.bf16.msra.mxu0 0
        %1451 = vmatpush.bf16.msra.mxu0 0
        %1452 = vmatpush.bf16.msra.mxu0 %v1443
        %1453 = vmatmul.bf16.gmra.mxu0 %v1440
        %v1454 = vpop.f32.mrf.mxu0
        %v1455 = vadd.f32 0.0, %v1454
        %v1456 = vpop.f32.mrf.mxu0
        %1457 = vdwg.mxu0
        %v1459 = vsel %vm1290, %v1413, 0
        %v1462 = vsel %vm1422, %v1417, 0
        %1464 = vmatpush.bf16.msra.mxu0 0
        %1465 = vmatpush.bf16.msra.mxu0 0
        %1466 = vmatpush.bf16.msra.mxu0 0
        %1467 = vmatpush.bf16.msra.mxu0 0
        %1468 = vmatpush.bf16.msra.mxu0 0
        %1469 = vmatpush.bf16.msra.mxu0 0
        %1470 = vmatpush.bf16.msra.mxu0 0
        %1471 = vmatpush.bf16.msra.mxu0 %v1462
        %1472 = vmatmul.bf16.gmra.mxu0 %v1459
        %v1473 = vpop.f32.mrf.mxu0
        %v1474 = vadd.f32 0.0, %v1473
        %v1475 = vpop.f32.mrf.mxu0
        %1476 = vdwg.mxu0
        %v1478 = vsel %vm1290, %v1414, 0
        %v1481 = vsel %vm1422, %v1418, 0
        %1483 = vmatpush.bf16.msra.mxu0 0
        %1484 = vmatpush.bf16.msra.mxu0 0
        %1485 = vmatpush.bf16.msra.mxu0 0
        %1486 = vmatpush.bf16.msra.mxu0 0
        %1487 = vmatpush.bf16.msra.mxu0 0
        %1488 = vmatpush.bf16.msra.mxu0 0
        %1489 = vmatpush.bf16.msra.mxu0 0
        %1490 = vmatpush.bf16.msra.mxu0 %v1481
        %1491 = vmatmul.bf16.gmra.mxu0 %v1478
        %v1492 = vpop.f32.mrf.mxu0
        %v1493 = vadd.f32 0.0, %v1492
        %v1494 = vpop.f32.mrf.mxu0
        %1495 = vdwg.mxu0
        %v1496 = vpack.c.bf16 %v1436, %v1436
        %v1497 = vpack.c.bf16 %v1455, %v1455
        %v1498 = vpack.c.bf16 %v1474, %v1474
        %v1499 = vpack.c.bf16 %v1493, %v1493
        %v1500 = vld [vmem:[%s834] sm:$0xf]
        %v1501 = vld [vmem:[%s834 + $0x4] sm:$0xf]
        %v1502 = vld [vmem:[%s834 + $0x8] sm:$0xf]
        %v1503 = vld [vmem:[%s834 + $0xc] sm:$0xf]
        %v1505 = vsel %vm1290, %v1496, 0
        %v1508 = vsel %vm1422, %v1500, 0
        %1510 = vmatpush.bf16.msra.mxu0 0
        %1511 = vmatpush.bf16.msra.mxu0 0
        %1512 = vmatpush.bf16.msra.mxu0 0
        %1513 = vmatpush.bf16.msra.mxu0 0
        %1514 = vmatpush.bf16.msra.mxu0 0
        %1515 = vmatpush.bf16.msra.mxu0 0
        %1516 = vmatpush.bf16.msra.mxu0 0
        %1517 = vmatpush.bf16.msra.mxu0 %v1508
        %1518 = vmatmul.bf16.gmra.mxu0 %v1505
        %v1519 = vpop.f32.mrf.mxu0
        %v1520 = vadd.f32 0.0, %v1519
        %v1521 = vpop.f32.mrf.mxu0
        %1522 = vdwg.mxu0
        %v1524 = vsel %vm1290, %v1497, 0
        %v1527 = vsel %vm1422, %v1501, 0
        %1529 = vmatpush.bf16.msra.mxu0 0
        %1530 = vmatpush.bf16.msra.mxu0 0
        %1531 = vmatpush.bf16.msra.mxu0 0
        %1532 = vmatpush.bf16.msra.mxu0 0
        %1533 = vmatpush.bf16.msra.mxu0 0
        %1534 = vmatpush.bf16.msra.mxu0 0
        %1535 = vmatpush.bf16.msra.mxu0 0
        %1536 = vmatpush.bf16.msra.mxu0 %v1527
        %1537 = vmatmul.bf16.gmra.mxu0 %v1524
        %v1538 = vpop.f32.mrf.mxu0
        %v1539 = vadd.f32 0.0, %v1538
        %v1540 = vpop.f32.mrf.mxu0
        %1541 = vdwg.mxu0
        %v1543 = vsel %vm1290, %v1498, 0
        %v1546 = vsel %vm1422, %v1502, 0
        %1548 = vmatpush.bf16.msra.mxu0 0
        %1549 = vmatpush.bf16.msra.mxu0 0
        %1550 = vmatpush.bf16.msra.mxu0 0
        %1551 = vmatpush.bf16.msra.mxu0 0
        %1552 = vmatpush.bf16.msra.mxu0 0
        %1553 = vmatpush.bf16.msra.mxu0 0
        %1554 = vmatpush.bf16.msra.mxu0 0
        %1555 = vmatpush.bf16.msra.mxu0 %v1546
        %1556 = vmatmul.bf16.gmra.mxu0 %v1543
        %v1557 = vpop.f32.mrf.mxu0
        %v1558 = vadd.f32 0.0, %v1557
        %v1559 = vpop.f32.mrf.mxu0
        %1560 = vdwg.mxu0
        %v1562 = vsel %vm1290, %v1499, 0
        %v1565 = vsel %vm1422, %v1503, 0
        %1567 = vmatpush.bf16.msra.mxu0 0
        %1568 = vmatpush.bf16.msra.mxu0 0
        %1569 = vmatpush.bf16.msra.mxu0 0
        %1570 = vmatpush.bf16.msra.mxu0 0
        %1571 = vmatpush.bf16.msra.mxu0 0
        %1572 = vmatpush.bf16.msra.mxu0 0
        %1573 = vmatpush.bf16.msra.mxu0 0
        %1574 = vmatpush.bf16.msra.mxu0 %v1565
        %1575 = vmatmul.bf16.gmra.mxu0 %v1562
        %v1576 = vpop.f32.mrf.mxu0
        %v1577 = vadd.f32 0.0, %v1576
        %v1578 = vpop.f32.mrf.mxu0
        %1579 = vdwg.mxu0
        %v1580 = vsel %vm923, %v1520, 0.0
        %v1581 = vsel %vm923, %v1539, 0.0
        %v1582 = vadd.f32 %v1580, %v1581
        %v1583 = vsel %vm923, %v1558, 0.0
        %v1584 = vadd.f32 %v1582, %v1583
        %v1585 = vsel %vm923, %v1577, 0.0
        %v1586 = vadd.f32 %v1584, %v1585
        %v1587 = vld [vmem:[%s837] sm:$0x1]
        %v1589 = vperm.slane %v1587, 0
        %v1591 = vadd.f32 %v1586, %v1589
        %v1592 = vadd.f32 %v1591, %v874
        %v1593 = vld [vmem:[%s840] sm:$0x1]
        %v1594 = vld [vmem:[%s843] sm:$0x1]
        %v1595 = vsel %vm923, %v1592, 0.0
        %1596 = vadd.xlane.f32.xlu0 %v1595
        %v1597 = vpop.xlane.xlu0 %1596
        %v1598 = vrcp.pop 32.0
        %v1599 = vmul.f32 32.0, %v1598
        %v1600 = vsub.f32 1.0, %v1599
        %v1601 = vmul.f32 %v1598, %v1600
        %v1602 = vadd.f32 %v1598, %v1601
        %vm1603 = vweird.f32 %v1598
        %v1604 = vsel %vm1603, %v1598, %v1602
        %v1605 = vmul.f32 %v1597, %v1604
        %v1606 = vsub.f32 %v1592, %v1605
        %v1607 = vmul.f32 %v1606, %v1606
        %v1608 = vsel %vm923, %v1607, 0.0
        %1609 = vadd.xlane.f32.xlu0 %v1608
        %v1610 = vpop.xlane.xlu0 %1609
        %v1611 = vmul.f32 %v1610, %v1604
        %v1612 = vadd.f32 %v1611, 1e-05
        %v1613 = vrsqrt.pop %v1612
        %v1614 = vmul.f32 %v1613, %v1612
        %v1615 = vmul.f32 %v1614, %v1613
        %v1616 = vmul.f32 0.5, %v1615
        %v1617 = vsub.f32 1.5, %v1616
        %v1618 = vmul.f32 %v1613, %v1617
        %vm1619 = vweird.f32 %v1612
        %vm1620 = vweird.f32 %v1613
        %vm1621 = vmor %vm1619, %vm1620
        %v1622 = vsel %vm1621, %v1613, %v1618
        %v1623 = vmul.f32 %v1606, %v1622
        %v1625 = vperm.slane %v1593, 0
        %v1627 = vmul.f32 %v1623, %v1625
        %v1629 = vperm.slane %v1594, 0
        %v1631 = vadd.f32 %v1627, %v1629
        %v1632 = vpack.c.bf16 %v1631, %v1631
        %v1633 = vld [vmem:[%s848] sm:$0xf]
        %v1634 = vld [vmem:[%s848 + $0x4] sm:$0xf]
        %v1635 = vld [vmem:[%s848 + $0x8] sm:$0xf]
        %v1636 = vld [vmem:[%s848 + $0xc] sm:$0xf]
        %v1637 = vld [vmem:[%s851] sm:$0x1]
        %v1639 = vperm.slane %v1637, 0
        %v1645 = vunpack.c.l.b16 %v1633
        %v1646 = vunpack.c.l.b16 %v1634
        %v1647 = vunpack.c.l.b16 %v1635
        %v1648 = vunpack.c.l.b16 %v1636
        %v1649 = vpack.c.b16 %v1646, %v1645
        %v1650 = vpack.c.b16 %v1648, %v1647
        %v1654 = vsel %vm923, %v1632, 0
        %1656 = vmatpush.bf16.msra.mxu0 0
        %1657 = vmatpush.bf16.msra.mxu0 0
        %1658 = vmatpush.bf16.msra.mxu0 0
        %1659 = vmatpush.bf16.msra.mxu0 0
        %1660 = vmatpush.bf16.msra.mxu0 0
        %1661 = vmatpush.bf16.msra.mxu0 0
        %1662 = vmatpush.bf16.msra.mxu0 %v1650
        %1663 = vmatpush.bf16.msra.mxu0 %v1649
        %1664 = vmatmul.bf16.gmra.mxu0 %v1654
        %v1665 = vpop.f32.mrf.mxu0
        %v1666 = vadd.f32 %v1639, %v1665
        %v1667 = vpop.f32.mrf.mxu0
        %1668 = vdwg.mxu0
        %v1669 = vmax.f32 %v1666, 0.0
        %v1670 = vpack.c.bf16 %v1669, %v1669
        %v1671 = vld [vmem:[%s856] sm:$0xf]
        %v1672 = vld [vmem:[%s856 + $0x4] sm:$0xf]
        %v1673 = vld [vmem:[%s856 + $0x8] sm:$0xf]
        %v1674 = vld [vmem:[%s856 + $0xc] sm:$0xf]
        %v1675 = vld [vmem:[%s856 + $0x10] sm:$0xf]
        %v1676 = vld [vmem:[%s856 + $0x14] sm:$0xf]
        %v1677 = vld [vmem:[%s856 + $0x18] sm:$0xf]
        %v1678 = vld [vmem:[%s856 + $0x1c] sm:$0xf]
        %v1679 = vld [vmem:[%s859] sm:$0x1]
        %v1681 = vperm.slane %v1679, 0
        %v1691 = vunpack.c.l.b16 %v1671
        %v1692 = vunpack.c.l.b16 %v1672
        %v1693 = vunpack.c.l.b16 %v1673
        %v1694 = vunpack.c.l.b16 %v1674
        %v1695 = vunpack.c.l.b16 %v1675
        %v1696 = vunpack.c.l.b16 %v1676
        %v1697 = vunpack.c.l.b16 %v1677
        %v1698 = vunpack.c.l.b16 %v1678
        %v1699 = vpack.c.b16 %v1692, %v1691
        %v1700 = vpack.c.b16 %v1694, %v1693
        %v1701 = vpack.c.b16 %v1696, %v1695
        %v1702 = vpack.c.b16 %v1698, %v1697
        %vm1707 = vcmask 523264
        %v1709 = vsel %vm1707, %v1670, 0
        %1711 = vmatpush.bf16.msra.mxu0 0
        %1712 = vmatpush.bf16.msra.mxu0 0
        %1713 = vmatpush.bf16.msra.mxu0 0
        %1714 = vmatpush.bf16.msra.mxu0 0
        %1715 = vmatpush.bf16.msra.mxu0 %v1702
        %1716 = vmatpush.bf16.msra.mxu0 %v1701
        %1717 = vmatpush.bf16.msra.mxu0 %v1700
        %1718 = vmatpush.bf16.msra.mxu0 %v1699
        %1719 = vmatmul.bf16.gmra.mxu0 %v1709
        %v1720 = vpop.f32.mrf.mxu0
        %v1721 = vadd.f32 %v1681, %v1720
        %v1722 = vpop.f32.mrf.mxu0
        %1723 = vdwg.mxu0
        %v1724 = vadd.f32 %v1721, %v1631
        %v1725 = vld [vmem:[%s862] sm:$0x1]
        %v1726 = vld [vmem:[%s865] sm:$0x1]
        %v1727 = vsel %vm923, %v1724, 0.0
        %1728 = vadd.xlane.f32.xlu0 %v1727
        %v1729 = vpop.xlane.xlu0 %1728
        %v1730 = vmul.f32 %v1729, %v1604
        %v1731 = vsub.f32 %v1724, %v1730
        %v1732 = vmul.f32 %v1731, %v1731
        %v1733 = vsel %vm923, %v1732, 0.0
        %1734 = vadd.xlane.f32.xlu0 %v1733
        %v1735 = vpop.xlane.xlu0 %1734
        %v1736 = vmul.f32 %v1735, %v1604
        %v1737 = vadd.f32 %v1736, 1e-05
        %v1738 = vrsqrt.pop %v1737
        %v1739 = vmul.f32 %v1738, %v1737
        %v1740 = vmul.f32 %v1739, %v1738
        %v1741 = vmul.f32 0.5, %v1740
        %v1742 = vsub.f32 1.5, %v1741
        %v1743 = vmul.f32 %v1738, %v1742
        %vm1744 = vweird.f32 %v1737
        %vm1745 = vweird.f32 %v1738
        %vm1746 = vmor %vm1744, %vm1745
        %v1747 = vsel %vm1746, %v1738, %v1743
        %v1748 = vmul.f32 %v1731, %v1747
        %v1750 = vperm.slane %v1725, 0
        %v1752 = vmul.f32 %v1748, %v1750
        %v1754 = vperm.slane %v1726, 0
        %v1756 = vadd.f32 %v1752, %v1754
        %1757 = vst.msk [vmem:[#allocation2] sm:$0xff] %vm923, %v1756
        %p1758 = scmp.eq.s32.totalorder %s37, 1
        // Predicated region
        $region97: #{tpu_custom_call.1} parent=91 // pred_check
          %p1759 = pneg %p1758
        $region98: #{tpu_custom_call.1} parent=91 // pred_check_branch
          %1761 = sbr.rel (%p1759) target = $region100
        $region99: #{tpu_custom_call.1} parent=91 // pred_region
          %1762 = vst.msk [vmem:[%s795] sm:$0xff] %vm923, %v1756
        $region100: #{tpu_custom_call.1} parent=91 // pred_fallthru
          _
        %s1763 = sand.u32 %s520, 1
        %s1764 = scalar_lea.sflag [#allocation4], %s1763
        %s1765 = sand.u32 %s520, 1
        %s1766 = smul.addr %s1765, 8
        %s1767 = scalar_lea.vmem [#allocation3], %s1766
        // Predicated region
        $region101: #{tpu_custom_call.1} parent=91 // pred_check
          %p1768 = pneg %p530
        $region102: #{tpu_custom_call.1} parent=91 // pred_check_branch
          %1770 = sbr.rel (%p1768) target = $region104
        $region103: #{tpu_custom_call.1} parent=91 // pred_region
          %1772 = vsyncadd %s1764, 0
          %s1773 = smul.addr %s36, 8
          %s1774 = scalar_lea.hbm %s18, %s1773
          %s1776 = sshll.u32 %s1767, 4
          %s1777 = int_to_ptr.vmem [resolvable:$true] %s1776
          %s1778 = sshll.u32 %s1774, 4
          %s1779 = int_to_ptr.hbm [resolvable:$true] %s1778
          %1781 = dma.vmem_to_hbm [thread:$0]  %s1777, 128, %s1779, %s1764
        $region104: #{tpu_custom_call.1} parent=91 // pred_fallthru
          _
      $region92: #{tpu_custom_call.1} parent=5 // pred_fallthru
        _
      %p1782 = scmp.le.s32.totalorder 2, %s27
      // Predicated region
      $region105: #{tpu_custom_call.1} parent=5 // pred_check
        %p1783 = pneg %p1782
      $region106: #{tpu_custom_call.1} parent=5 // pred_check_branch
        %1785 = sbr.rel (%p1783) target = $region108
      $region107: #{tpu_custom_call.1} parent=5 // pred_region
        %s1786 = ssub.s32 %s27, 2
        // Predicated region
        $region109: #{tpu_custom_call.1} parent=107 // pred_check
          %p1787 = pneg %p536
        $region110: #{tpu_custom_call.1} parent=107 // pred_check_branch
          %1789 = sbr.rel (%p1787) target = $region112
        $region111: #{tpu_custom_call.1} parent=107 // pred_region
          %s1790 = sand.u32 %s521, 1
          %s1791 = scalar_lea.sflag [#allocation4], %s1790
          %s1792 = sand.u32 %s521, 1
          %s1793 = smul.addr %s1792, 8
          %s1794 = scalar_lea.vmem [#allocation3], %s1793
          %1796 = dma.done %s1791, 128
        $region112: #{tpu_custom_call.1} parent=107 // pred_fallthru
          _
      $region108: #{tpu_custom_call.1} parent=5 // pred_fallthru
        _
    $region6: #{tpu_custom_call.1} parent=1 // loop_footer
      %s31 = sadd.s32 1, %s27
    $region7: #{tpu_custom_call.1} parent=1 // loop_footer_branch
      %26 = sbr.rel target = $region3
    $region8: #{tpu_custom_call.1} parent=1 // loop_exit
      _
    %1797 = vsyncpa [#allocation4], 1
    %s1798 = scalar_lea.sflag [#allocation4], 1
    %1799 = vsyncpa %s1798, 1

</llo_original>
